<compile_context>
chip_gen: v6e
topology: v6e:2x2x1
jax: 0.10.0
libtpu: 0.0.40
codegen_flags: <defaults>
</compile_context>

<pallas_src>
import functools

import jax
import jax.numpy as jnp
from jax import lax
from jax.experimental import pallas as pl
from jax.experimental.pallas import tpu as pltpu

EPS = 1e-5
HALO_PAD = 16  # rows per side; bf16 sublane-tile (16,128) aligned interior


def basic_block_kernel(x_ref, rhs1_ref, g1_ref, b1_ref,
                       rhs2_ref, g2_ref, b2_ref, p_ref,
                       out_ref, xp_ref, *, pad):
    # x_ref:    (N, H, W*C) f32   input activations (NHWC with (W, C) flattened)
    # rhs*_ref: (3*W*C, W*C) bf16 banded conv weights (3x3/stride-1/pad-1 conv)
    # g*/b*_ref:(1, W*C) f32      BN gamma/beta tiled W times along lanes
    # p_ref:    (W*C, W*C) f32    P[i,j] = 1/(N*H*W) if lane i, j share a channel
    # out_ref:  (N, H, W*C) f32
    # xp_ref:   (N, H + 2*pad, W*C) bf16 scratch, interior at rows [pad, pad+H)
    N, H, WC = x_ref.shape
    NH = N * H

    # ---- stage input (bf16) into the sublane-aligned, halo-padded scratch ----
    zeros_pad = jnp.zeros((N, pad, WC), xp_ref.dtype)
    xp_ref[:, 0:pad, :] = zeros_pad            # top halo block (aligned, unmasked)
    xp_ref[:, pad + H:, :] = zeros_pad         # bottom halo block
    x_f32 = x_ref[...]                         # read once; reused as the residual
    xp_ref[:, pad:pad + H, :] = x_f32.astype(xp_ref.dtype)

    def conv_as_matmul(rhs_ref):
        # 3x3 / stride-1 / pad-1 conv as 3 accumulated K=WC bf16 matmuls
        # (one per vertical tap); width padding is folded into the banded RHS.
        acc = None
        for kh in range(3):
            r0 = pad - 1 + kh
            lhs = xp_ref[:, r0:r0 + H, :].reshape(NH, WC)          # bf16
            part = jnp.dot(lhs, rhs_ref[kh * WC:(kh + 1) * WC, :],
                           preferred_element_type=jnp.float32)
            acc = part if acc is None else acc + part
        return acc                                                 # (NH, WC) f32

    def fused_bn_scale_bias(acc, g, b):
        # Training-mode batch statistics, folded to a single per-element FMA:
        #   y = acc * scale + bias
        # One (2, WC) x (WC, WC) dot broadcasts per-channel (mean, E[x^2]) to
        # all same-channel lanes (1/m already folded into p_ref).
        s = jnp.sum(acc, axis=0, keepdims=True)                    # (1, WC)
        ss = jnp.sum(acc * acc, axis=0, keepdims=True)             # (1, WC)
        stats = jnp.concatenate([s, ss], axis=0)                   # (2, WC)
        red = jnp.dot(stats, p_ref[...], preferred_element_type=jnp.float32)
        mean, ex2 = red[0:1, :], red[1:2, :]
        var = jnp.maximum(ex2 - mean * mean, 0.0)                  # clamp cancellation
        scale = g * lax.rsqrt(var + EPS)                           # rsqrt -> EUP
        bias = b - mean * scale
        return scale, bias

    # ---- conv1 -> bn1 -> relu ----
    acc1 = conv_as_matmul(rhs1_ref)
    sc1, bi1 = fused_bn_scale_bias(acc1, g1_ref[...], b1_ref[...])
    y1 = jnp.maximum(acc1 * sc1 + bi1, 0.0)

    # ---- conv2 (reuse scratch; halo blocks are still zero) ----
    xp_ref[:, pad:pad + H, :] = y1.reshape(N, H, WC).astype(xp_ref.dtype)
    acc2 = conv_as_matmul(rhs2_ref)
    sc2, bi2 = fused_bn_scale_bias(acc2, g2_ref[...], b2_ref[...])

    # ---- bn2 + residual add + relu, fused, lane-dense store ----
    identity = x_f32.reshape(NH, WC)
    y2 = jnp.maximum(acc2 * sc2 + bi2 + identity, 0.0)
    out_ref[...] = y2.reshape(N, H, WC).astype(out_ref.dtype)


def band_conv_weight(w, width):
    """(3, 3, Cin, Cout) HWIO -> (3*width*Cin, width*Cout) banded matrix.

    With activations laid out as rows (n, h) x lanes (w, c), a 3x3 / stride-1 /
    pad-1 conv becomes LHS[(n,h), (kh, w_in, ci)] @ RHS[(kh, w_in, ci), (w_out, co)]
    where RHS[kh, w_in, ci, w_out, co] = w[kh, w_in - w_out + 1, ci, co] if the
    tap is in range, else 0 (width zero-padding is implicit in the band).
    """
    _, _, cin, cout = w.shape
    wi = jnp.arange(width)[:, None]
    wo = jnp.arange(width)[None, :]
    tap = wi - wo + 1
    valid = ((tap >= 0) & (tap <= 2)).astype(w.dtype)
    tap_c = jnp.clip(tap, 0, 2)
    r = w[:, tap_c, :, :]                                  # (3, Win, Wout, Cin, Cout)
    r = r * valid[None, :, :, None, None]
    r = jnp.transpose(r, (0, 1, 3, 2, 4))                  # (3, Win, Cin, Wout, Cout)
    return r.reshape(3 * width * cin, width * cout)


def basic_block(x, w1, g1, b1, w2, g2, b2):
    """x: (N, H, W, C) float32 NHWC; stride=1, in_channels == out_channels."""
    N, H, W, C = x.shape
    assert w1.shape == (3, 3, C, C) and w2.shape == (3, 3, C, C)
    WC = W * C
    assert WC % 128 == 0, "W*C must be a multiple of 128 for the lane-dense layout"
    assert H % 8 == 0

    x3 = x.reshape(N, H, WC)                               # free: same memory layout
    rhs1 = band_conv_weight(w1, W).astype(jnp.bfloat16)    # bf16 MXU operands
    rhs2 = band_conv_weight(w2, W).astype(jnp.bfloat16)
    g1t = jnp.tile(g1.reshape(1, C), (1, W)).astype(jnp.float32)
    b1t = jnp.tile(b1.reshape(1, C), (1, W)).astype(jnp.float32)
    g2t = jnp.tile(g2.reshape(1, C), (1, W)).astype(jnp.float32)
    b2t = jnp.tile(b2.reshape(1, C), (1, W)).astype(jnp.float32)
    lane_ch = jnp.arange(WC) % C
    inv_m = 1.0 / float(N * H * W)
    # channel-broadcast matrix with the 1/m normalization folded in
    p_mat = (lane_ch[:, None] == lane_ch[None, :]).astype(jnp.float32) * inv_m

    args = (x3, rhs1, g1t, b1t, rhs2, g2t, b2t, p_mat)

    def full_spec(a):
        return pl.BlockSpec(a.shape, lambda i, nd=a.ndim: (0,) * nd)

    flops = 2 * 2 * (N * H) * (3 * WC) * WC                # two banded conv matmuls
    bytes_accessed = (4 * x3.size + 4 * N * H * WC         # in + out activations
                      + 2 * (rhs1.size + rhs2.size)        # bf16 weights
                      + 4 * p_mat.size + 4 * 4 * WC)       # P + gamma/beta
    cost = pl.CostEstimate(flops=int(flops),
                           transcendentals=int(2 * WC),
                           bytes_accessed=int(bytes_accessed))

    out = pl.pallas_call(
        functools.partial(basic_block_kernel, pad=HALO_PAD),
        out_shape=jax.ShapeDtypeStruct((N, H, WC), x.dtype),
        grid=(1,),
        in_specs=[full_spec(a) for a in args],
        out_specs=pl.BlockSpec((N, H, WC), lambda i: (0, 0, 0)),
        scratch_shapes=[pltpu.VMEM((N, H + 2 * HALO_PAD, WC), jnp.bfloat16)],
        compiler_params=pltpu.CompilerParams(
            dimension_semantics=("arbitrary",)),
        cost_estimate=cost,
    )(*args)
    return out.reshape(N, H, W, C)


def reference(x, w1, g1, b1, w2, g2, b2):
    """Pure-JAX f32 reference mirroring PyTorch BasicBlock.forward (training-mode BN)."""
    def conv(a, w):
        return lax.conv_general_dilated(
            a, w, window_strides=(1, 1), padding=((1, 1), (1, 1)),
            dimension_numbers=("NHWC", "HWIO", "NHWC"))

    def bn(a, g, b):
        m = jnp.mean(a, axis=(0, 1, 2), keepdims=True)
        c = a - m
        v = jnp.mean(c * c, axis=(0, 1, 2), keepdims=True)
        return c * lax.rsqrt(v + EPS) * g + b

    out = jax.nn.relu(bn(conv(x, w1), g1, b1))
    out = bn(conv(out, w2), g2, b2) + x
    return jax.nn.relu(out)


if __name__ == "__main__":
    # small deterministic setup: batch=2, channels=8, spatial=16x16, stride=1
    N, H, W, C = 2, 16, 16, 8
    key = jax.random.PRNGKey(0)
    kx, kw1, kw2 = jax.random.split(key, 3)
    x = jax.random.normal(kx, (N, H, W, C), jnp.float32)
    w1 = 0.1 * jax.random.normal(kw1, (3, 3, C, C), jnp.float32)
    w2 = 0.1 * jax.random.normal(kw2, (3, 3, C, C), jnp.float32)
    g1 = 1.0 + 0.1 * jnp.arange(C, dtype=jnp.float32)
    b1 = 0.05 * jnp.arange(C, dtype=jnp.float32)
    g2 = 1.0 - 0.05 * jnp.arange(C, dtype=jnp.float32)
    b2 = -0.02 * jnp.arange(C, dtype=jnp.float32)

    out = basic_block(x, w1, g1, b1, w2, g2, b2)
    out = jax.block_until_ready(out)

    ref = reference(x, w1, g1, b1, w2, g2, b2)
    err = float(jnp.max(jnp.abs(out - ref)))
    # Tolerance reflects bf16 MXU operands (f32 accumulation) vs. pure-f32 ref.
    assert jnp.isfinite(err), "non-finite output"
    assert jnp.allclose(out, ref, atol=1e-1, rtol=1e-1), f"max abs err {err}"
    print("KERNEL_OK")
</pallas_src>

<mosaic_0001>
module attributes {stable_mosaic.version = 11 : i64} {
  func.func @basic_block_kernel(%arg0: i32, %arg1: memref<2x16x128xf32, #tpu.memory_space<vmem>>, %arg2: memref<384x128xbf16, #tpu.memory_space<vmem>>, %arg3: memref<1x128xf32, #tpu.memory_space<vmem>>, %arg4: memref<1x128xf32, #tpu.memory_space<vmem>>, %arg5: memref<384x128xbf16, #tpu.memory_space<vmem>>, %arg6: memref<1x128xf32, #tpu.memory_space<vmem>>, %arg7: memref<1x128xf32, #tpu.memory_space<vmem>>, %arg8: memref<128x128xf32, #tpu.memory_space<vmem>>, %arg9: memref<2x16x128xf32, #tpu.memory_space<vmem>>, %arg10: memref<2x48x128xbf16, #tpu.memory_space<vmem>>) attributes {dimension_semantics = [#tpu.dimension_semantics<arbitrary>], iteration_bounds = array<i64: 1>, scalar_prefetch = 0 : i64, scratch_operands = 1 : i64, tpu.core_type = #tpu.core_type<tc>, window_params = [{pipeline_mode = #tpu.pipeline_mode<synchronous>, transform_indices = @transform_0, window_bounds = array<i64: 2, 16, 128>}, {pipeline_mode = #tpu.pipeline_mode<synchronous>, transform_indices = @transform_1, window_bounds = array<i64: 384, 128>}, {pipeline_mode = #tpu.pipeline_mode<synchronous>, transform_indices = @transform_2, window_bounds = array<i64: 1, 128>}, {pipeline_mode = #tpu.pipeline_mode<synchronous>, transform_indices = @transform_3, window_bounds = array<i64: 1, 128>}, {pipeline_mode = #tpu.pipeline_mode<synchronous>, transform_indices = @transform_4, window_bounds = array<i64: 384, 128>}, {pipeline_mode = #tpu.pipeline_mode<synchronous>, transform_indices = @transform_5, window_bounds = array<i64: 1, 128>}, {pipeline_mode = #tpu.pipeline_mode<synchronous>, transform_indices = @transform_6, window_bounds = array<i64: 1, 128>}, {pipeline_mode = #tpu.pipeline_mode<synchronous>, transform_indices = @transform_7, window_bounds = array<i64: 128, 128>}, {pipeline_mode = #tpu.pipeline_mode<synchronous>, transform_indices = @transform_8, window_bounds = array<i64: 2, 16, 128>}]} {
    %cst = arith.constant 0.000000e+00 : bf16
    %0 = vector.broadcast %cst : bf16 to vector<2x16x128xbf16>
    %c0 = arith.constant 0 : index
    %c0_0 = arith.constant 0 : index
    %c0_1 = arith.constant 0 : index
    %1 = vector.load %arg10[%c0, %c0_0, %c0_1] : memref<2x48x128xbf16, #tpu.memory_space<vmem>>, vector<2x16x128xbf16>
    tpu.vector_store %arg10[%c0, %c0_0, %c0_1], %0 {strides = array<i32>} : memref<2x48x128xbf16, #tpu.memory_space<vmem>>, vector<2x16x128xbf16>,
    %c0_2 = arith.constant 0 : index
    %c32 = arith.constant 32 : index
    %c0_3 = arith.constant 0 : index
    %2 = vector.load %arg10[%c0_2, %c32, %c0_3] : memref<2x48x128xbf16, #tpu.memory_space<vmem>>, vector<2x16x128xbf16>
    tpu.vector_store %arg10[%c0_2, %c32, %c0_3], %0 {strides = array<i32>} : memref<2x48x128xbf16, #tpu.memory_space<vmem>>, vector<2x16x128xbf16>,
    %c0_4 = arith.constant 0 : index
    %c0_5 = arith.constant 0 : index
    %c0_6 = arith.constant 0 : index
    %3 = vector.load %arg1[%c0_4, %c0_5, %c0_6] : memref<2x16x128xf32, #tpu.memory_space<vmem>>, vector<2x16x128xf32>
    %4 = arith.truncf %3 : vector<2x16x128xf32> to vector<2x16x128xbf16>
    %c0_7 = arith.constant 0 : index
    %c16 = arith.constant 16 : index
    %c0_8 = arith.constant 0 : index
    %5 = vector.load %arg10[%c0_7, %c16, %c0_8] : memref<2x48x128xbf16, #tpu.memory_space<vmem>>, vector<2x16x128xbf16>
    tpu.vector_store %arg10[%c0_7, %c16, %c0_8], %4 {strides = array<i32>} : memref<2x48x128xbf16, #tpu.memory_space<vmem>>, vector<2x16x128xbf16>,
    %c0_9 = arith.constant 0 : index
    %c15 = arith.constant 15 : index
    %c0_10 = arith.constant 0 : index
    %6 = vector.load %arg10[%c0_9, %c15, %c0_10] : memref<2x48x128xbf16, #tpu.memory_space<vmem>>, vector<2x16x128xbf16>
    %7 = vector.shape_cast %6 : vector<2x16x128xbf16> to vector<32x128xbf16>
    %c0_11 = arith.constant 0 : index
    %c0_12 = arith.constant 0 : index
    %8 = vector.load %arg2[%c0_11, %c0_12] : memref<384x128xbf16, #tpu.memory_space<vmem>>, vector<128x128xbf16>
    %cst_13 = arith.constant dense<0.000000e+00> : vector<32x128xf32>
    %9 = tpu.matmul %7, %8, %cst_13 {dimension_numbers = #tpu.dot_dimension_numbers<[1], [0], [0], [1], [0, 0, 1, 1], [], []>} : vector<32x128xbf16>, vector<128x128xbf16>, vector<32x128xf32> -> vector<32x128xf32>
    %c0_14 = arith.constant 0 : index
    %c16_15 = arith.constant 16 : index
    %c0_16 = arith.constant 0 : index
    %10 = vector.load %arg10[%c0_14, %c16_15, %c0_16] : memref<2x48x128xbf16, #tpu.memory_space<vmem>>, vector<2x16x128xbf16>
    %11 = vector.shape_cast %10 : vector<2x16x128xbf16> to vector<32x128xbf16>
    %c128 = arith.constant 128 : index
    %c0_17 = arith.constant 0 : index
    %12 = vector.load %arg2[%c128, %c0_17] : memref<384x128xbf16, #tpu.memory_space<vmem>>, vector<128x128xbf16>
    %cst_18 = arith.constant dense<0.000000e+00> : vector<32x128xf32>
    %13 = tpu.matmul %11, %12, %cst_18 {dimension_numbers = #tpu.dot_dimension_numbers<[1], [0], [0], [1], [0, 0, 1, 1], [], []>} : vector<32x128xbf16>, vector<128x128xbf16>, vector<32x128xf32> -> vector<32x128xf32>
    %14 = arith.addf %9, %13 : vector<32x128xf32>
    %c0_19 = arith.constant 0 : index
    %c17 = arith.constant 17 : index
    %c0_20 = arith.constant 0 : index
    %15 = vector.load %arg10[%c0_19, %c17, %c0_20] : memref<2x48x128xbf16, #tpu.memory_space<vmem>>, vector<2x16x128xbf16>
    %16 = vector.shape_cast %15 : vector<2x16x128xbf16> to vector<32x128xbf16>
    %c256 = arith.constant 256 : index
    %c0_21 = arith.constant 0 : index
    %17 = vector.load %arg2[%c256, %c0_21] : memref<384x128xbf16, #tpu.memory_space<vmem>>, vector<128x128xbf16>
    %cst_22 = arith.constant dense<0.000000e+00> : vector<32x128xf32>
    %18 = tpu.matmul %16, %17, %cst_22 {dimension_numbers = #tpu.dot_dimension_numbers<[1], [0], [0], [1], [0, 0, 1, 1], [], []>} : vector<32x128xbf16>, vector<128x128xbf16>, vector<32x128xf32> -> vector<32x128xf32>
    %19 = arith.addf %14, %18 : vector<32x128xf32>
    %c0_23 = arith.constant 0 : index
    %c0_24 = arith.constant 0 : index
    %20 = vector.load %arg3[%c0_23, %c0_24] : memref<1x128xf32, #tpu.memory_space<vmem>>, vector<1x128xf32>
    %c0_25 = arith.constant 0 : index
    %c0_26 = arith.constant 0 : index
    %21 = vector.load %arg4[%c0_25, %c0_26] : memref<1x128xf32, #tpu.memory_space<vmem>>, vector<1x128xf32>
    %cst_27 = arith.constant dense<0.000000e+00> : vector<128xf32>
    %22 = vector.multi_reduction <add>, %19, %cst_27 [0] : vector<32x128xf32> to vector<128xf32>
    %23 = vector.shape_cast %22 : vector<128xf32> to vector<1x128xf32>
    %24 = arith.mulf %19, %19 : vector<32x128xf32>
    %cst_28 = arith.constant dense<0.000000e+00> : vector<128xf32>
    %25 = vector.multi_reduction <add>, %24, %cst_28 [0] : vector<32x128xf32> to vector<128xf32>
    %26 = vector.shape_cast %25 : vector<128xf32> to vector<1x128xf32>
    %27 = tpu.concatenate %23, %26 in 0 : vector<1x128xf32>, vector<1x128xf32> -> vector<2x128xf32>
    %c0_29 = arith.constant 0 : index
    %c0_30 = arith.constant 0 : index
    %28 = vector.load %arg8[%c0_29, %c0_30] : memref<128x128xf32, #tpu.memory_space<vmem>>, vector<128x128xf32>
    %cst_31 = arith.constant dense<0.000000e+00> : vector<2x128xf32>
    %29 = tpu.matmul %27, %28, %cst_31 {dimension_numbers = #tpu.dot_dimension_numbers<[1], [0], [0], [1], [0, 0, 1, 1], [], []>} : vector<2x128xf32>, vector<128x128xf32>, vector<2x128xf32> -> vector<2x128xf32>
    %30 = vector.extract_strided_slice %29 {offsets = [0, 0], sizes = [1, 128], strides = [1, 1]} : vector<2x128xf32> to vector<1x128xf32>
    %31 = vector.extract_strided_slice %29 {offsets = [1, 0], sizes = [1, 128], strides = [1, 1]} : vector<2x128xf32> to vector<1x128xf32>
    %32 = arith.mulf %30, %30 : vector<1x128xf32>
    %33 = arith.subf %31, %32 : vector<1x128xf32>
    %cst_32 = arith.constant 0.000000e+00 : f32
    %34 = vector.broadcast %cst_32 : f32 to vector<1x128xf32>
    %35 = arith.maximumf %33, %34 : vector<1x128xf32>
    %cst_33 = arith.constant 9.99999974E-6 : f32
    %36 = vector.broadcast %cst_33 : f32 to vector<1x128xf32>
    %37 = arith.addf %35, %36 : vector<1x128xf32>
    %38 = math.rsqrt %37 : vector<1x128xf32>
    %39 = arith.mulf %20, %38 : vector<1x128xf32>
    %40 = arith.mulf %30, %39 : vector<1x128xf32>
    %41 = arith.subf %21, %40 : vector<1x128xf32>
    %42 = vector.broadcast %39 : vector<1x128xf32> to vector<32x128xf32>
    %43 = arith.mulf %19, %42 : vector<32x128xf32>
    %44 = vector.broadcast %41 : vector<1x128xf32> to vector<32x128xf32>
    %45 = arith.addf %43, %44 : vector<32x128xf32>
    %cst_34 = arith.constant 0.000000e+00 : f32
    %46 = vector.broadcast %cst_34 : f32 to vector<32x128xf32>
    %47 = arith.maximumf %45, %46 : vector<32x128xf32>
    %48 = vector.shape_cast %47 : vector<32x128xf32> to vector<2x16x128xf32>
    %49 = arith.truncf %48 : vector<2x16x128xf32> to vector<2x16x128xbf16>
    %c0_35 = arith.constant 0 : index
    %c16_36 = arith.constant 16 : index
    %c0_37 = arith.constant 0 : index
    %50 = vector.load %arg10[%c0_35, %c16_36, %c0_37] : memref<2x48x128xbf16, #tpu.memory_space<vmem>>, vector<2x16x128xbf16>
    tpu.vector_store %arg10[%c0_35, %c16_36, %c0_37], %49 {strides = array<i32>} : memref<2x48x128xbf16, #tpu.memory_space<vmem>>, vector<2x16x128xbf16>,
    %c0_38 = arith.constant 0 : index
    %c15_39 = arith.constant 15 : index
    %c0_40 = arith.constant 0 : index
    %51 = vector.load %arg10[%c0_38, %c15_39, %c0_40] : memref<2x48x128xbf16, #tpu.memory_space<vmem>>, vector<2x16x128xbf16>
    %52 = vector.shape_cast %51 : vector<2x16x128xbf16> to vector<32x128xbf16>
    %c0_41 = arith.constant 0 : index
    %c0_42 = arith.constant 0 : index
    %53 = vector.load %arg5[%c0_41, %c0_42] : memref<384x128xbf16, #tpu.memory_space<vmem>>, vector<128x128xbf16>
    %cst_43 = arith.constant dense<0.000000e+00> : vector<32x128xf32>
    %54 = tpu.matmul %52, %53, %cst_43 {dimension_numbers = #tpu.dot_dimension_numbers<[1], [0], [0], [1], [0, 0, 1, 1], [], []>} : vector<32x128xbf16>, vector<128x128xbf16>, vector<32x128xf32> -> vector<32x128xf32>
    %c0_44 = arith.constant 0 : index
    %c16_45 = arith.constant 16 : index
    %c0_46 = arith.constant 0 : index
    %55 = vector.load %arg10[%c0_44, %c16_45, %c0_46] : memref<2x48x128xbf16, #tpu.memory_space<vmem>>, vector<2x16x128xbf16>
    %56 = vector.shape_cast %55 : vector<2x16x128xbf16> to vector<32x128xbf16>
    %c128_47 = arith.constant 128 : index
    %c0_48 = arith.constant 0 : index
    %57 = vector.load %arg5[%c128_47, %c0_48] : memref<384x128xbf16, #tpu.memory_space<vmem>>, vector<128x128xbf16>
    %cst_49 = arith.constant dense<0.000000e+00> : vector<32x128xf32>
    %58 = tpu.matmul %56, %57, %cst_49 {dimension_numbers = #tpu.dot_dimension_numbers<[1], [0], [0], [1], [0, 0, 1, 1], [], []>} : vector<32x128xbf16>, vector<128x128xbf16>, vector<32x128xf32> -> vector<32x128xf32>
    %59 = arith.addf %54, %58 : vector<32x128xf32>
    %c0_50 = arith.constant 0 : index
    %c17_51 = arith.constant 17 : index
    %c0_52 = arith.constant 0 : index
    %60 = vector.load %arg10[%c0_50, %c17_51, %c0_52] : memref<2x48x128xbf16, #tpu.memory_space<vmem>>, vector<2x16x128xbf16>
    %61 = vector.shape_cast %60 : vector<2x16x128xbf16> to vector<32x128xbf16>
    %c256_53 = arith.constant 256 : index
    %c0_54 = arith.constant 0 : index
    %62 = vector.load %arg5[%c256_53, %c0_54] : memref<384x128xbf16, #tpu.memory_space<vmem>>, vector<128x128xbf16>
    %cst_55 = arith.constant dense<0.000000e+00> : vector<32x128xf32>
    %63 = tpu.matmul %61, %62, %cst_55 {dimension_numbers = #tpu.dot_dimension_numbers<[1], [0], [0], [1], [0, 0, 1, 1], [], []>} : vector<32x128xbf16>, vector<128x128xbf16>, vector<32x128xf32> -> vector<32x128xf32>
    %64 = arith.addf %59, %63 : vector<32x128xf32>
    %c0_56 = arith.constant 0 : index
    %c0_57 = arith.constant 0 : index
    %65 = vector.load %arg6[%c0_56, %c0_57] : memref<1x128xf32, #tpu.memory_space<vmem>>, vector<1x128xf32>
    %c0_58 = arith.constant 0 : index
    %c0_59 = arith.constant 0 : index
    %66 = vector.load %arg7[%c0_58, %c0_59] : memref<1x128xf32, #tpu.memory_space<vmem>>, vector<1x128xf32>
    %cst_60 = arith.constant dense<0.000000e+00> : vector<128xf32>
    %67 = vector.multi_reduction <add>, %64, %cst_60 [0] : vector<32x128xf32> to vector<128xf32>
    %68 = vector.shape_cast %67 : vector<128xf32> to vector<1x128xf32>
    %69 = arith.mulf %64, %64 : vector<32x128xf32>
    %cst_61 = arith.constant dense<0.000000e+00> : vector<128xf32>
    %70 = vector.multi_reduction <add>, %69, %cst_61 [0] : vector<32x128xf32> to vector<128xf32>
    %71 = vector.shape_cast %70 : vector<128xf32> to vector<1x128xf32>
    %72 = tpu.concatenate %68, %71 in 0 : vector<1x128xf32>, vector<1x128xf32> -> vector<2x128xf32>
    %c0_62 = arith.constant 0 : index
    %c0_63 = arith.constant 0 : index
    %73 = vector.load %arg8[%c0_62, %c0_63] : memref<128x128xf32, #tpu.memory_space<vmem>>, vector<128x128xf32>
    %cst_64 = arith.constant dense<0.000000e+00> : vector<2x128xf32>
    %74 = tpu.matmul %72, %73, %cst_64 {dimension_numbers = #tpu.dot_dimension_numbers<[1], [0], [0], [1], [0, 0, 1, 1], [], []>} : vector<2x128xf32>, vector<128x128xf32>, vector<2x128xf32> -> vector<2x128xf32>
    %75 = vector.extract_strided_slice %74 {offsets = [0, 0], sizes = [1, 128], strides = [1, 1]} : vector<2x128xf32> to vector<1x128xf32>
    %76 = vector.extract_strided_slice %74 {offsets = [1, 0], sizes = [1, 128], strides = [1, 1]} : vector<2x128xf32> to vector<1x128xf32>
    %77 = arith.mulf %75, %75 : vector<1x128xf32>
    %78 = arith.subf %76, %77 : vector<1x128xf32>
    %cst_65 = arith.constant 0.000000e+00 : f32
    %79 = vector.broadcast %cst_65 : f32 to vector<1x128xf32>
    %80 = arith.maximumf %78, %79 : vector<1x128xf32>
    %cst_66 = arith.constant 9.99999974E-6 : f32
    %81 = vector.broadcast %cst_66 : f32 to vector<1x128xf32>
    %82 = arith.addf %80, %81 : vector<1x128xf32>
    %83 = math.rsqrt %82 : vector<1x128xf32>
    %84 = arith.mulf %65, %83 : vector<1x128xf32>
    %85 = arith.mulf %75, %84 : vector<1x128xf32>
    %86 = arith.subf %66, %85 : vector<1x128xf32>
    %87 = vector.shape_cast %3 : vector<2x16x128xf32> to vector<32x128xf32>
    %88 = vector.broadcast %84 : vector<1x128xf32> to vector<32x128xf32>
    %89 = arith.mulf %64, %88 : vector<32x128xf32>
    %90 = vector.broadcast %86 : vector<1x128xf32> to vector<32x128xf32>
    %91 = arith.addf %89, %90 : vector<32x128xf32>
    %92 = arith.addf %91, %87 : vector<32x128xf32>
    %cst_67 = arith.constant 0.000000e+00 : f32
    %93 = vector.broadcast %cst_67 : f32 to vector<32x128xf32>
    %94 = arith.maximumf %92, %93 : vector<32x128xf32>
    %95 = vector.shape_cast %94 : vector<32x128xf32> to vector<2x16x128xf32>
    %c0_68 = arith.constant 0 : index
    %c0_69 = arith.constant 0 : index
    %c0_70 = arith.constant 0 : index
    %96 = vector.load %arg9[%c0_68, %c0_69, %c0_70] : memref<2x16x128xf32, #tpu.memory_space<vmem>>, vector<2x16x128xf32>
    tpu.vector_store %arg9[%c0_68, %c0_69, %c0_70], %95 {strides = array<i32>} : memref<2x16x128xf32, #tpu.memory_space<vmem>>, vector<2x16x128xf32>,
    return
  }
  func.func @transform_0(%arg0: i32) -> (i32, i32, i32) {
    %c0_i32 = arith.constant 0 : i32
    %c0_i32_0 = arith.constant 0 : i32
    %c0_i32_1 = arith.constant 0 : i32
    %c0_i32_2 = arith.constant 0 : i32
    return %c0_i32, %c0_i32_0, %c0_i32_1 : i32, i32, i32
  }
  func.func @transform_1(%arg0: i32) -> (i32, i32) {
    %c0_i32 = arith.constant 0 : i32
    %c0_i32_0 = arith.constant 0 : i32
    %c0_i32_1 = arith.constant 0 : i32
    return %c0_i32, %c0_i32_0 : i32, i32
  }
  func.func @transform_2(%arg0: i32) -> (i32, i32) {
    %c0_i32 = arith.constant 0 : i32
    %c0_i32_0 = arith.constant 0 : i32
    %c0_i32_1 = arith.constant 0 : i32
    return %c0_i32, %c0_i32_0 : i32, i32
  }
  func.func @transform_3(%arg0: i32) -> (i32, i32) {
    %c0_i32 = arith.constant 0 : i32
    %c0_i32_0 = arith.constant 0 : i32
    %c0_i32_1 = arith.constant 0 : i32
    return %c0_i32, %c0_i32_0 : i32, i32
  }
  func.func @transform_4(%arg0: i32) -> (i32, i32) {
    %c0_i32 = arith.constant 0 : i32
    %c0_i32_0 = arith.constant 0 : i32
    %c0_i32_1 = arith.constant 0 : i32
    return %c0_i32, %c0_i32_0 : i32, i32
  }
  func.func @transform_5(%arg0: i32) -> (i32, i32) {
    %c0_i32 = arith.constant 0 : i32
    %c0_i32_0 = arith.constant 0 : i32
    %c0_i32_1 = arith.constant 0 : i32
    return %c0_i32, %c0_i32_0 : i32, i32
  }
  func.func @transform_6(%arg0: i32) -> (i32, i32) {
    %c0_i32 = arith.constant 0 : i32
    %c0_i32_0 = arith.constant 0 : i32
    %c0_i32_1 = arith.constant 0 : i32
    return %c0_i32, %c0_i32_0 : i32, i32
  }
  func.func @transform_7(%arg0: i32) -> (i32, i32) {
    %c0_i32 = arith.constant 0 : i32
    %c0_i32_0 = arith.constant 0 : i32
    %c0_i32_1 = arith.constant 0 : i32
    return %c0_i32, %c0_i32_0 : i32, i32
  }
  func.func @transform_8(%arg0: i32) -> (i32, i32, i32) {
    %c0_i32 = arith.constant 0 : i32
    %c0_i32_0 = arith.constant 0 : i32
    %c0_i32_1 = arith.constant 0 : i32
    %c0_i32_2 = arith.constant 0 : i32
    return %c0_i32, %c0_i32_0, %c0_i32_1 : i32, i32, i32
  }
}

</mosaic_0001>

<llo_original>
// kernel: tpu_custom_call.1
$region0: #{tpu_custom_call.1}
  #allocation0 [shape = 'u32[]', space=smem, size = 0x4, offset = 0x4, fixed_abs, tag = 'smem constant byte address 0x4 - core index']
  #allocation1 [shape = 'u32[144,128]{1,0:T(1,128)}', space=vmem, size = 0x12000, scoped, tag = 'internal scratch']
  #allocation2 [shape = 'bf16[2,48,128]{2,1,0:T(8,128)(2,1)}', space=vmem, size = 0x6000, scoped, tag = 'scratch operand']
  %s0 = inlined_call_operand.hbm [shape: f32[2,16,128], index: 0, kind: input, shape index: {}]
  %s1 = inlined_call_operand.hbm [shape: bf16[384,128], index: 1, kind: input, shape index: {}]
  %s2 = inlined_call_operand.vmem [shape: f32[1,128], index: 2, kind: input, shape index: {}]
  %s3 = inlined_call_operand.vmem [shape: f32[1,128], index: 3, kind: input, shape index: {}]
  %s4 = inlined_call_operand.hbm [shape: bf16[384,128], index: 4, kind: input, shape index: {}]
  %s5 = inlined_call_operand.vmem [shape: f32[1,128], index: 5, kind: input, shape index: {}]
  %s6 = inlined_call_operand.vmem [shape: f32[1,128], index: 6, kind: input, shape index: {}]
  %s7 = inlined_call_operand.hbm [shape: f32[128,128], index: 7, kind: input, shape index: {}]
  %s8 = inlined_call_operand.hbm [shape: f32[2,16,128], index: 8, kind: output, shape index: {}]
  %s9 = sld [smem:[#allocation0]]
  $region58: #{tpu_custom_call.1} parent=0
    _
  %s11 = ssub.s32 1, %s9
  %s12 = scalar_select 0, %s11, %s9
  $region1: #{tpu_custom_call.1} parent=0
    #allocation3 [shape = 'u8[16384]{0}', space=vmem, size = 0x4000, scoped, tag = 'input window, operand 0, single buffered']
    #allocation4 [shape = 's32[1]{0}', space=sflag, size = 0x4, scoped, tag = 'scoped memory for tpu_custom_call.1']
    #allocation5 [shape = 's32[1]{0}', space=sflag, size = 0x4, scoped, tag = 'scoped memory for tpu_custom_call.1']
    #allocation6 [shape = 'u8[98304]{0}', space=vmem, size = 0x18000, scoped, tag = 'input window, operand 1, single buffered']
    #allocation7 [shape = 's32[1]{0}', space=sflag, size = 0x4, scoped, tag = 'scoped memory for tpu_custom_call.1']
    #allocation8 [shape = 'u8[98304]{0}', space=vmem, size = 0x18000, scoped, tag = 'input window, operand 4, single buffered']
    #allocation9 [shape = 'u8[65536]{0}', space=vmem, size = 0x10000, scoped, tag = 'input window, operand 7, single buffered']
    #allocation10 [shape = 's32[1]{0}', space=sflag, size = 0x4, scoped, tag = 'scoped memory for tpu_custom_call.1']
    #allocation11 [shape = 'u8[16384]{0}', space=vmem, size = 0x4000, scoped, tag = 'output window, operand 0, single buffered']
    %13 = vsyncpa [#allocation4], 0
    %14 = vsyncpa [#allocation7], 0
    %15 = vsyncpa [#allocation10], 0
    %16 = vsyncpa [#allocation5], 0
    // Predicated region
    $region2: #{tpu_custom_call.1} parent=1 // pred_check
      _
    $region3: #{tpu_custom_call.1} parent=1 // pred_check_branch
      %18 = sbr.rel (0) target = $region5
    $region4: #{tpu_custom_call.1} parent=1 // pred_region
      %s20 = ssub.s32 512, 512
      %21 = vsyncadd [#allocation4], %s20
      %s22 = sshll.u32 [#allocation3], 4
      %s23 = int_to_ptr.vmem [resolvable:$true] %s22
      %28 = dma.hbm_to_vmem [thread:$0]  %s0, 512, %s23, [#allocation4], 128, 128, 8
    $region5: #{tpu_custom_call.1} parent=1 // pred_fallthru
      _
    // Predicated region
    $region6: #{tpu_custom_call.1} parent=1 // pred_check
      _
    $region7: #{tpu_custom_call.1} parent=1 // pred_check_branch
      %30 = sbr.rel (0) target = $region9
    $region8: #{tpu_custom_call.1} parent=1 // pred_region
      %s32 = ssub.s32 3072, 3072
      %33 = vsyncadd [#allocation7], %s32
      %s34 = sshll.u32 [#allocation6], 4
      %s35 = int_to_ptr.vmem [resolvable:$true] %s34
      %40 = dma.hbm_to_vmem [thread:$0]  %s1, 3072, %s35, [#allocation7], 64, 64, 4
    $region9: #{tpu_custom_call.1} parent=1 // pred_fallthru
      _
    // Predicated region
    $region10: #{tpu_custom_call.1} parent=1 // pred_check
      _
    $region11: #{tpu_custom_call.1} parent=1 // pred_check_branch
      %42 = sbr.rel (0) target = $region13
    $region12: #{tpu_custom_call.1} parent=1 // pred_region
      _
    $region13: #{tpu_custom_call.1} parent=1 // pred_fallthru
      _
    // Predicated region
    $region14: #{tpu_custom_call.1} parent=1 // pred_check
      _
    $region15: #{tpu_custom_call.1} parent=1 // pred_check_branch
      %44 = sbr.rel (0) target = $region17
    $region16: #{tpu_custom_call.1} parent=1 // pred_region
      _
    $region17: #{tpu_custom_call.1} parent=1 // pred_fallthru
      _
    // Predicated region
    $region18: #{tpu_custom_call.1} parent=1 // pred_check
      _
    $region19: #{tpu_custom_call.1} parent=1 // pred_check_branch
      %46 = sbr.rel (0) target = $region21
    $region20: #{tpu_custom_call.1} parent=1 // pred_region
      %s48 = ssub.s32 3072, 3072
      %49 = vsyncadd [#allocation7], %s48
      %s50 = sshll.u32 [#allocation8], 4
      %s51 = int_to_ptr.vmem [resolvable:$true] %s50
      %56 = dma.hbm_to_vmem [thread:$0]  %s4, 3072, %s51, [#allocation7], 64, 64, 4
    $region21: #{tpu_custom_call.1} parent=1 // pred_fallthru
      _
    // Predicated region
    $region22: #{tpu_custom_call.1} parent=1 // pred_check
      _
    $region23: #{tpu_custom_call.1} parent=1 // pred_check_branch
      %58 = sbr.rel (0) target = $region25
    $region24: #{tpu_custom_call.1} parent=1 // pred_region
      _
    $region25: #{tpu_custom_call.1} parent=1 // pred_fallthru
      _
    // Predicated region
    $region26: #{tpu_custom_call.1} parent=1 // pred_check
      _
    $region27: #{tpu_custom_call.1} parent=1 // pred_check_branch
      %60 = sbr.rel (0) target = $region29
    $region28: #{tpu_custom_call.1} parent=1 // pred_region
      _
    $region29: #{tpu_custom_call.1} parent=1 // pred_fallthru
      _
    // Predicated region
    $region30: #{tpu_custom_call.1} parent=1 // pred_check
      _
    $region31: #{tpu_custom_call.1} parent=1 // pred_check_branch
      %62 = sbr.rel (0) target = $region33
    $region32: #{tpu_custom_call.1} parent=1 // pred_region
      %s64 = ssub.s32 2048, 2048
      %65 = vsyncadd [#allocation10], %s64
      %s66 = sshll.u32 [#allocation9], 4
      %s67 = int_to_ptr.vmem [resolvable:$true] %s66
      %72 = dma.hbm_to_vmem [thread:$0]  %s7, 2048, %s67, [#allocation10], 128, 128, 8
    $region33: #{tpu_custom_call.1} parent=1 // pred_fallthru
      _
    // Predicated region
    $region34: #{tpu_custom_call.1} parent=1 // pred_check
      _
    $region35: #{tpu_custom_call.1} parent=1 // pred_check_branch
      %74 = sbr.rel (0) target = $region37
    $region36: #{tpu_custom_call.1} parent=1 // pred_region
      %75 = dma.done [#allocation4], 512
    $region37: #{tpu_custom_call.1} parent=1 // pred_fallthru
      _
    // Predicated region
    $region38: #{tpu_custom_call.1} parent=1 // pred_check
      _
    $region39: #{tpu_custom_call.1} parent=1 // pred_check_branch
      %77 = sbr.rel (0) target = $region41
    $region40: #{tpu_custom_call.1} parent=1 // pred_region
      %78 = dma.done [#allocation7], 3072
    $region41: #{tpu_custom_call.1} parent=1 // pred_fallthru
      _
    // Predicated region
    $region42: #{tpu_custom_call.1} parent=1 // pred_check
      _
    $region43: #{tpu_custom_call.1} parent=1 // pred_check_branch
      %80 = sbr.rel (0) target = $region45
    $region44: #{tpu_custom_call.1} parent=1 // pred_region
      %81 = dma.done [#allocation7], 3072
    $region45: #{tpu_custom_call.1} parent=1 // pred_fallthru
      _
    // Predicated region
    $region46: #{tpu_custom_call.1} parent=1 // pred_check
      _
    $region47: #{tpu_custom_call.1} parent=1 // pred_check_branch
      %83 = sbr.rel (0) target = $region49
    $region48: #{tpu_custom_call.1} parent=1 // pred_region
      %84 = dma.done [#allocation10], 2048
    $region49: #{tpu_custom_call.1} parent=1 // pred_fallthru
      _
    %86 = vst [vmem:[#allocation2] sm:$0xf] 0
    %87 = vst [vmem:[#allocation2 + $0x4] sm:$0xf] 0
    %88 = vst [vmem:[#allocation2 + $0x18] sm:$0xf] 0
    %89 = vst [vmem:[#allocation2 + $0x1c] sm:$0xf] 0
    %90 = vst [vmem:[#allocation2 + $0x10] sm:$0xf] 0
    %91 = vst [vmem:[#allocation2 + $0x14] sm:$0xf] 0
    %92 = vst [vmem:[#allocation2 + $0x28] sm:$0xf] 0
    %93 = vst [vmem:[#allocation2 + $0x2c] sm:$0xf] 0
    %v94 = vld [vmem:[#allocation3] sm:$0xff]
    %v95 = vld [vmem:[#allocation3 + $0x8] sm:$0xff]
    %v96 = vld [vmem:[#allocation3 + $0x10] sm:$0xff]
    %v97 = vld [vmem:[#allocation3 + $0x18] sm:$0xff]
    %v98 = vpack.c.bf16 %v95, %v94
    %v99 = vpack.c.bf16 %v97, %v96
    %v102 = vunpack.c.l.b16 %v98
    %v103 = vunpack.c.h.b16 %v98
    %v104 = vunpack.c.l.b16 %v99
    %v105 = vunpack.c.h.b16 %v99
    %v106 = vpack.c.b16 %v102, %v102
    %v107 = vpack.c.b16 %v103, %v103
    %v108 = vpack.c.b16 %v104, %v104
    %v109 = vpack.c.b16 %v105, %v105
    %114 = vst [vmem:[#allocation2 + $0x8] sm:$0xf] %v106
    %115 = vst [vmem:[#allocation2 + $0xc] sm:$0xf] %v107
    %116 = vst [vmem:[#allocation2 + $0x20] sm:$0xf] %v108
    %117 = vst [vmem:[#allocation2 + $0x24] sm:$0xf] %v109
    %v118 = vld [vmem:[#allocation2 + $0x4] sm:$0x8]
    %v119 = vld [vmem:[#allocation2 + $0x8] sm:$0xf]
    %v120 = vld [vmem:[#allocation2 + $0xc] sm:$0xf]
    %v121 = vld [vmem:[#allocation2 + $0x1c] sm:$0x8]
    %v122 = vld [vmem:[#allocation2 + $0x20] sm:$0xf]
    %v123 = vld [vmem:[#allocation2 + $0x24] sm:$0xf]
    %vm124 = vsmask.f32 256
    %vm125 = vsmask.f32 4368
    %vm126 = vmor %vm124, %vm125
    %v128 = vshrl.u32 %v118, 16
    %v130 = vrot.slane %v128, 7
    %v131 = vrot.slane %v130, 4
    %v133 = vshrl.u32 %v119, 16
    %v135 = vrot.slane %v133, 7
    %v136 = vshll.u32 %v119, 16
    %v138 = vor.u32 %v135, %v136
    %v139 = vsel %vm126, %v131, %v138
    %v140 = vrot.slane %v135, 4
    %v142 = vshrl.u32 %v120, 16
    %v144 = vrot.slane %v142, 7
    %v145 = vshll.u32 %v120, 16
    %v147 = vor.u32 %v144, %v145
    %v148 = vsel %vm126, %v140, %v147
    %v150 = vshrl.u32 %v121, 16
    %v152 = vrot.slane %v150, 7
    %v153 = vrot.slane %v152, 4
    %v155 = vshrl.u32 %v122, 16
    %v157 = vrot.slane %v155, 7
    %v158 = vshll.u32 %v122, 16
    %v160 = vor.u32 %v157, %v158
    %v161 = vsel %vm126, %v153, %v160
    %v162 = vrot.slane %v157, 4
    %v164 = vshrl.u32 %v123, 16
    %v166 = vrot.slane %v164, 7
    %v167 = vshll.u32 %v123, 16
    %v169 = vor.u32 %v166, %v167
    %v170 = vsel %vm126, %v162, %v169
    %v171 = vld [vmem:[#allocation6] sm:$0xf]
    %v172 = vld [vmem:[#allocation6 + $0x4] sm:$0xf]
    %v173 = vld [vmem:[#allocation6 + $0x8] sm:$0xf]
    %v174 = vld [vmem:[#allocation6 + $0xc] sm:$0xf]
    %v175 = vld [vmem:[#allocation6 + $0x10] sm:$0xf]
    %v176 = vld [vmem:[#allocation6 + $0x14] sm:$0xf]
    %v177 = vld [vmem:[#allocation6 + $0x18] sm:$0xf]
    %v178 = vld [vmem:[#allocation6 + $0x1c] sm:$0xf]
    %v179 = vld [vmem:[#allocation6 + $0x20] sm:$0xf]
    %v180 = vld [vmem:[#allocation6 + $0x24] sm:$0xf]
    %v181 = vld [vmem:[#allocation6 + $0x28] sm:$0xf]
    %v182 = vld [vmem:[#allocation6 + $0x2c] sm:$0xf]
    %v183 = vld [vmem:[#allocation6 + $0x30] sm:$0xf]
    %v184 = vld [vmem:[#allocation6 + $0x34] sm:$0xf]
    %v185 = vld [vmem:[#allocation6 + $0x38] sm:$0xf]
    %v186 = vld [vmem:[#allocation6 + $0x3c] sm:$0xf]
    %v187 = vld [vmem:[#allocation6 + $0x40] sm:$0xf]
    %v188 = vld [vmem:[#allocation6 + $0x44] sm:$0xf]
    %v189 = vld [vmem:[#allocation6 + $0x48] sm:$0xf]
    %v190 = vld [vmem:[#allocation6 + $0x4c] sm:$0xf]
    %v191 = vld [vmem:[#allocation6 + $0x50] sm:$0xf]
    %v192 = vld [vmem:[#allocation6 + $0x54] sm:$0xf]
    %v193 = vld [vmem:[#allocation6 + $0x58] sm:$0xf]
    %v194 = vld [vmem:[#allocation6 + $0x5c] sm:$0xf]
    %v195 = vld [vmem:[#allocation6 + $0x60] sm:$0xf]
    %v196 = vld [vmem:[#allocation6 + $0x64] sm:$0xf]
    %v197 = vld [vmem:[#allocation6 + $0x68] sm:$0xf]
    %v198 = vld [vmem:[#allocation6 + $0x6c] sm:$0xf]
    %v199 = vld [vmem:[#allocation6 + $0x70] sm:$0xf]
    %v200 = vld [vmem:[#allocation6 + $0x74] sm:$0xf]
    %v201 = vld [vmem:[#allocation6 + $0x78] sm:$0xf]
    %v202 = vld [vmem:[#allocation6 + $0x7c] sm:$0xf]
    %v207 = vunpack.c.l.b16 %v119
    %v208 = vunpack.c.l.b16 %v120
    %v209 = vunpack.c.l.b16 %v122
    %v210 = vunpack.c.l.b16 %v123
    %v211 = vpack.c.b16 %v208, %v207
    %v212 = vpack.c.b16 %v210, %v209
    %v231 = vunpack.c.l.b16 %v187
    %v232 = vunpack.c.l.b16 %v188
    %v233 = vunpack.c.l.b16 %v189
    %v234 = vunpack.c.l.b16 %v190
    %v235 = vunpack.c.l.b16 %v191
    %v236 = vunpack.c.l.b16 %v192
    %v237 = vunpack.c.l.b16 %v193
    %v238 = vunpack.c.l.b16 %v194
    %v239 = vunpack.c.l.b16 %v195
    %v240 = vunpack.c.l.b16 %v196
    %v241 = vunpack.c.l.b16 %v197
    %v242 = vunpack.c.l.b16 %v198
    %v243 = vunpack.c.l.b16 %v199
    %v244 = vunpack.c.l.b16 %v200
    %v245 = vunpack.c.l.b16 %v201
    %v246 = vunpack.c.l.b16 %v202
    %v247 = vpack.c.b16 %v232, %v231
    %v248 = vpack.c.b16 %v234, %v233
    %v249 = vpack.c.b16 %v236, %v235
    %v250 = vpack.c.b16 %v238, %v237
    %v251 = vpack.c.b16 %v240, %v239
    %v252 = vpack.c.b16 %v242, %v241
    %v253 = vpack.c.b16 %v244, %v243
    %v254 = vpack.c.b16 %v246, %v245
    %263 = vmatprep.subr.bf16.mxu0 0
    %264 = vmatpush1.bf16.msra.mxu0 %v254
    %265 = vmatprep.subr.bf16.mxu0 0
    %266 = vmatpush1.bf16.msra.mxu0 %v253
    %267 = vmatprep.subr.bf16.mxu0 0
    %268 = vmatpush1.bf16.msra.mxu0 %v252
    %269 = vmatprep.subr.bf16.mxu0 0
    %270 = vmatpush1.bf16.msra.mxu0 %v251
    %271 = vmatprep.subr.bf16.mxu0 0
    %272 = vmatpush1.bf16.msra.mxu0 %v250
    %273 = vmatprep.subr.bf16.mxu0 0
    %274 = vmatpush1.bf16.msra.mxu0 %v249
    %275 = vmatprep.subr.bf16.mxu0 0
    %276 = vmatpush1.bf16.msra.mxu0 %v248
    %277 = vmatprep.subr.bf16.mxu0 0
    %278 = vmatpush1.bf16.msra.mxu0 %v247
    %279 = vmatprep.subr.bf16.mxu0 0
    %280 = vmatpush2.bf16.msra.mxu0 0
    %281 = vmatprep.subr.bf16.mxu0 0
    %282 = vmatpush2.bf16.msra.mxu0 0
    %283 = vmatprep.subr.bf16.mxu0 0
    %284 = vmatpush2.bf16.msra.mxu0 0
    %285 = vmatprep.subr.bf16.mxu0 0
    %286 = vmatpush2.bf16.msra.mxu0 0
    %287 = vmatprep.subr.bf16.mxu0 0
    %288 = vmatpush2.bf16.msra.mxu0 0
    %289 = vmatprep.subr.bf16.mxu0 0
    %290 = vmatpush2.bf16.msra.mxu0 0
    %291 = vmatprep.subr.bf16.mxu0 0
    %292 = vmatpush2.bf16.msra.mxu0 0
    %293 = vmatprep.subr.bf16.mxu0 0
    %294 = vmatpush2.bf16.msra.mxu0 0
    %295 = vmatprep.mubr.bf16.mxu0 0
    %296 = vmatmul.mubr.bf16.gmra.mxu0 %v211
    %v297 = vpop.f32.mrf.mxu0
    %v298 = vadd.f32 0.0, %v297
    %v299 = vpop.f32.mrf.mxu0
    %v300 = vpop.f32.mrf.mxu0
    %v301 = vadd.f32 0.0, %v300
    %v302 = vpop.f32.mrf.mxu0
    %303 = vmatprep.mubr.bf16.mxu0 0
    %304 = vmatmul.mubr.bf16.gmra.mxu0 %v212
    %v305 = vpop.f32.mrf.mxu0
    %v306 = vadd.f32 0.0, %v305
    %v307 = vpop.f32.mrf.mxu0
    %v308 = vpop.f32.mrf.mxu0
    %v309 = vadd.f32 0.0, %v308
    %v310 = vpop.f32.mrf.mxu0
    %311 = vdwg.mxu0
    %v312 = vunpack.c.l.b16 %v139
    %v313 = vunpack.c.l.b16 %v148
    %v314 = vunpack.c.l.b16 %v161
    %v315 = vunpack.c.l.b16 %v170
    %v316 = vpack.c.b16 %v313, %v312
    %v317 = vpack.c.b16 %v315, %v314
    %v336 = vunpack.c.l.b16 %v171
    %v337 = vunpack.c.l.b16 %v172
    %v338 = vunpack.c.l.b16 %v173
    %v339 = vunpack.c.l.b16 %v174
    %v340 = vunpack.c.l.b16 %v175
    %v341 = vunpack.c.l.b16 %v176
    %v342 = vunpack.c.l.b16 %v177
    %v343 = vunpack.c.l.b16 %v178
    %v344 = vunpack.c.l.b16 %v179
    %v345 = vunpack.c.l.b16 %v180
    %v346 = vunpack.c.l.b16 %v181
    %v347 = vunpack.c.l.b16 %v182
    %v348 = vunpack.c.l.b16 %v183
    %v349 = vunpack.c.l.b16 %v184
    %v350 = vunpack.c.l.b16 %v185
    %v351 = vunpack.c.l.b16 %v186
    %v352 = vpack.c.b16 %v337, %v336
    %v353 = vpack.c.b16 %v339, %v338
    %v354 = vpack.c.b16 %v341, %v340
    %v355 = vpack.c.b16 %v343, %v342
    %v356 = vpack.c.b16 %v345, %v344
    %v357 = vpack.c.b16 %v347, %v346
    %v358 = vpack.c.b16 %v349, %v348
    %v359 = vpack.c.b16 %v351, %v350
    %368 = vmatprep.subr.bf16.mxu0 0
    %369 = vmatpush1.bf16.msra.mxu0 %v359
    %370 = vmatprep.subr.bf16.mxu0 0
    %371 = vmatpush1.bf16.msra.mxu0 %v358
    %372 = vmatprep.subr.bf16.mxu0 0
    %373 = vmatpush1.bf16.msra.mxu0 %v357
    %374 = vmatprep.subr.bf16.mxu0 0
    %375 = vmatpush1.bf16.msra.mxu0 %v356
    %376 = vmatprep.subr.bf16.mxu0 0
    %377 = vmatpush1.bf16.msra.mxu0 %v355
    %378 = vmatprep.subr.bf16.mxu0 0
    %379 = vmatpush1.bf16.msra.mxu0 %v354
    %380 = vmatprep.subr.bf16.mxu0 0
    %381 = vmatpush1.bf16.msra.mxu0 %v353
    %382 = vmatprep.subr.bf16.mxu0 0
    %383 = vmatpush1.bf16.msra.mxu0 %v352
    %384 = vmatprep.subr.bf16.mxu0 0
    %385 = vmatpush2.bf16.msra.mxu0 0
    %386 = vmatprep.subr.bf16.mxu0 0
    %387 = vmatpush2.bf16.msra.mxu0 0
    %388 = vmatprep.subr.bf16.mxu0 0
    %389 = vmatpush2.bf16.msra.mxu0 0
    %390 = vmatprep.subr.bf16.mxu0 0
    %391 = vmatpush2.bf16.msra.mxu0 0
    %392 = vmatprep.subr.bf16.mxu0 0
    %393 = vmatpush2.bf16.msra.mxu0 0
    %394 = vmatprep.subr.bf16.mxu0 0
    %395 = vmatpush2.bf16.msra.mxu0 0
    %396 = vmatprep.subr.bf16.mxu0 0
    %397 = vmatpush2.bf16.msra.mxu0 0
    %398 = vmatprep.subr.bf16.mxu0 0
    %399 = vmatpush2.bf16.msra.mxu0 0
    %400 = vmatprep.mubr.bf16.mxu0 0
    %401 = vmatmul.mubr.bf16.gmra.mxu0 %v316
    %v402 = vpop.f32.mrf.mxu0
    %v403 = vadd.f32 %v298, %v402
    %v404 = vpop.f32.mrf.mxu0
    %v405 = vpop.f32.mrf.mxu0
    %v406 = vadd.f32 %v301, %v405
    %v407 = vpop.f32.mrf.mxu0
    %408 = vmatprep.mubr.bf16.mxu0 0
    %409 = vmatmul.mubr.bf16.gmra.mxu0 %v317
    %v410 = vpop.f32.mrf.mxu0
    %v411 = vadd.f32 %v306, %v410
    %v412 = vpop.f32.mrf.mxu0
    %v413 = vpop.f32.mrf.mxu0
    %v414 = vadd.f32 %v309, %v413
    %v415 = vpop.f32.mrf.mxu0
    %416 = vdwg.mxu0
    %v417 = vld [vmem:[#allocation2 + $0x8] sm:$0xf]
    %v418 = vld [vmem:[#allocation2 + $0xc] sm:$0xf]
    %v419 = vld [vmem:[#allocation2 + $0x10] sm:$0x1]
    %v420 = vld [vmem:[#allocation2 + $0x20] sm:$0xf]
    %v421 = vld [vmem:[#allocation2 + $0x24] sm:$0xf]
    %v422 = vld [vmem:[#allocation2 + $0x28] sm:$0x1]
    %vm423 = vsmask.f32 3328
    %vm424 = vsmask.f32 7440
    %vm425 = vmor %vm423, %vm424
    %v427 = vshrl.u32 %v417, 16
    %v429 = vrot.slane %v427, 4
    %v430 = vshll.u32 %v417, 16
    %v432 = vrot.slane %v430, 5
    %v433 = vor.u32 %v429, %v432
    %v434 = vrot.slane %v433, 4
    %v436 = vshll.u32 %v418, 16
    %v438 = vrot.slane %v436, 5
    %v439 = vsel %vm425, %v434, %v438
    %v440 = vshrl.u32 %v418, 16
    %v442 = vrot.slane %v440, 4
    %v443 = vor.u32 %v442, %v438
    %v444 = vrot.slane %v443, 4
    %v446 = vshll.u32 %v419, 16
    %v448 = vrot.slane %v446, 5
    %v449 = vsel %vm425, %v444, %v448
    %v451 = vshrl.u32 %v420, 16
    %v453 = vrot.slane %v451, 4
    %v454 = vshll.u32 %v420, 16
    %v456 = vrot.slane %v454, 5
    %v457 = vor.u32 %v453, %v456
    %v458 = vrot.slane %v457, 4
    %v460 = vshll.u32 %v421, 16
    %v462 = vrot.slane %v460, 5
    %v463 = vsel %vm425, %v458, %v462
    %v464 = vshrl.u32 %v421, 16
    %v466 = vrot.slane %v464, 4
    %v467 = vor.u32 %v466, %v462
    %v468 = vrot.slane %v467, 4
    %v470 = vshll.u32 %v422, 16
    %v472 = vrot.slane %v470, 5
    %v473 = vsel %vm425, %v468, %v472
    %v474 = vld [vmem:[#allocation6 + $0x80] sm:$0xf]
    %v475 = vld [vmem:[#allocation6 + $0x84] sm:$0xf]
    %v476 = vld [vmem:[#allocation6 + $0x88] sm:$0xf]
    %v477 = vld [vmem:[#allocation6 + $0x8c] sm:$0xf]
    %v478 = vld [vmem:[#allocation6 + $0x90] sm:$0xf]
    %v479 = vld [vmem:[#allocation6 + $0x94] sm:$0xf]
    %v480 = vld [vmem:[#allocation6 + $0x98] sm:$0xf]
    %v481 = vld [vmem:[#allocation6 + $0x9c] sm:$0xf]
    %v482 = vld [vmem:[#allocation6 + $0xa0] sm:$0xf]
    %v483 = vld [vmem:[#allocation6 + $0xa4] sm:$0xf]
    %v484 = vld [vmem:[#allocation6 + $0xa8] sm:$0xf]
    %v485 = vld [vmem:[#allocation6 + $0xac] sm:$0xf]
    %v486 = vld [vmem:[#allocation6 + $0xb0] sm:$0xf]
    %v487 = vld [vmem:[#allocation6 + $0xb4] sm:$0xf]
    %v488 = vld [vmem:[#allocation6 + $0xb8] sm:$0xf]
    %v489 = vld [vmem:[#allocation6 + $0xbc] sm:$0xf]
    %v490 = vunpack.c.l.b16 %v439
    %v491 = vunpack.c.l.b16 %v449
    %v492 = vunpack.c.l.b16 %v463
    %v493 = vunpack.c.l.b16 %v473
    %v494 = vpack.c.b16 %v491, %v490
    %v495 = vpack.c.b16 %v493, %v492
    %v514 = vunpack.c.l.b16 %v474
    %v515 = vunpack.c.l.b16 %v475
    %v516 = vunpack.c.l.b16 %v476
    %v517 = vunpack.c.l.b16 %v477
    %v518 = vunpack.c.l.b16 %v478
    %v519 = vunpack.c.l.b16 %v479
    %v520 = vunpack.c.l.b16 %v480
    %v521 = vunpack.c.l.b16 %v481
    %v522 = vunpack.c.l.b16 %v482
    %v523 = vunpack.c.l.b16 %v483
    %v524 = vunpack.c.l.b16 %v484
    %v525 = vunpack.c.l.b16 %v485
    %v526 = vunpack.c.l.b16 %v486
    %v527 = vunpack.c.l.b16 %v487
    %v528 = vunpack.c.l.b16 %v488
    %v529 = vunpack.c.l.b16 %v489
    %v530 = vpack.c.b16 %v515, %v514
    %v531 = vpack.c.b16 %v517, %v516
    %v532 = vpack.c.b16 %v519, %v518
    %v533 = vpack.c.b16 %v521, %v520
    %v534 = vpack.c.b16 %v523, %v522
    %v535 = vpack.c.b16 %v525, %v524
    %v536 = vpack.c.b16 %v527, %v526
    %v537 = vpack.c.b16 %v529, %v528
    %546 = vmatprep.subr.bf16.mxu0 0
    %547 = vmatpush1.bf16.msra.mxu0 %v537
    %548 = vmatprep.subr.bf16.mxu0 0
    %549 = vmatpush1.bf16.msra.mxu0 %v536
    %550 = vmatprep.subr.bf16.mxu0 0
    %551 = vmatpush1.bf16.msra.mxu0 %v535
    %552 = vmatprep.subr.bf16.mxu0 0
    %553 = vmatpush1.bf16.msra.mxu0 %v534
    %554 = vmatprep.subr.bf16.mxu0 0
    %555 = vmatpush1.bf16.msra.mxu0 %v533
    %556 = vmatprep.subr.bf16.mxu0 0
    %557 = vmatpush1.bf16.msra.mxu0 %v532
    %558 = vmatprep.subr.bf16.mxu0 0
    %559 = vmatpush1.bf16.msra.mxu0 %v531
    %560 = vmatprep.subr.bf16.mxu0 0
    %561 = vmatpush1.bf16.msra.mxu0 %v530
    %562 = vmatprep.subr.bf16.mxu0 0
    %563 = vmatpush2.bf16.msra.mxu0 0
    %564 = vmatprep.subr.bf16.mxu0 0
    %565 = vmatpush2.bf16.msra.mxu0 0
    %566 = vmatprep.subr.bf16.mxu0 0
    %567 = vmatpush2.bf16.msra.mxu0 0
    %568 = vmatprep.subr.bf16.mxu0 0
    %569 = vmatpush2.bf16.msra.mxu0 0
    %570 = vmatprep.subr.bf16.mxu0 0
    %571 = vmatpush2.bf16.msra.mxu0 0
    %572 = vmatprep.subr.bf16.mxu0 0
    %573 = vmatpush2.bf16.msra.mxu0 0
    %574 = vmatprep.subr.bf16.mxu0 0
    %575 = vmatpush2.bf16.msra.mxu0 0
    %576 = vmatprep.subr.bf16.mxu0 0
    %577 = vmatpush2.bf16.msra.mxu0 0
    %578 = vmatprep.mubr.bf16.mxu0 0
    %579 = vmatmul.mubr.bf16.gmra.mxu0 %v494
    %v580 = vpop.f32.mrf.mxu0
    %v581 = vadd.f32 0.0, %v580
    %v582 = vpop.f32.mrf.mxu0
    %v583 = vpop.f32.mrf.mxu0
    %v584 = vadd.f32 0.0, %v583
    %v585 = vpop.f32.mrf.mxu0
    %586 = vmatprep.mubr.bf16.mxu0 0
    %587 = vmatmul.mubr.bf16.gmra.mxu0 %v495
    %v588 = vpop.f32.mrf.mxu0
    %v589 = vadd.f32 0.0, %v588
    %v590 = vpop.f32.mrf.mxu0
    %v591 = vpop.f32.mrf.mxu0
    %v592 = vadd.f32 0.0, %v591
    %v593 = vpop.f32.mrf.mxu0
    %594 = vdwg.mxu0
    %v595 = vadd.f32 %v403, %v581
    %v596 = vadd.f32 %v406, %v584
    %v597 = vadd.f32 %v411, %v589
    %v598 = vadd.f32 %v414, %v592
    %v599 = vld [vmem:[%s2] sm:$0x1]
    %v600 = vld [vmem:[%s3] sm:$0x1]
    %v601 = vadd.f32 %v595, %v596
    %v602 = vadd.f32 %v601, %v597
    %v603 = vadd.f32 %v602, %v598
    %v604 = vrot.slane %v603, 4
    %v605 = vadd.f32 %v603, %v604
    %v606 = vrot.slane %v605, 2
    %v607 = vadd.f32 %v605, %v606
    %v608 = vrot.slane %v607, 1
    %v609 = vadd.f32 %v607, %v608
    %v610 = vmul.f32 %v595, %v595
    %v611 = vmul.f32 %v596, %v596
    %v612 = vmul.f32 %v597, %v597
    %v613 = vmul.f32 %v598, %v598
    %v614 = vadd.f32 %v610, %v611
    %v615 = vadd.f32 %v614, %v612
    %v616 = vadd.f32 %v615, %v613
    %v617 = vrot.slane %v616, 4
    %v618 = vadd.f32 %v616, %v617
    %v619 = vrot.slane %v618, 2
    %v620 = vadd.f32 %v618, %v619
    %v621 = vrot.slane %v620, 1
    %v622 = vadd.f32 %v620, %v621
    %vm623 = vcmask 1040384
    %v624 = vsel %vm623, %v609, %v622
    %v625 = vld [vmem:[#allocation9] sm:$0xff]
    %v626 = vld [vmem:[#allocation9 + $0x8] sm:$0xff]
    %v627 = vld [vmem:[#allocation9 + $0x10] sm:$0xff]
    %v628 = vld [vmem:[#allocation9 + $0x18] sm:$0xff]
    %v629 = vld [vmem:[#allocation9 + $0x20] sm:$0xff]
    %v630 = vld [vmem:[#allocation9 + $0x28] sm:$0xff]
    %v631 = vld [vmem:[#allocation9 + $0x30] sm:$0xff]
    %v632 = vld [vmem:[#allocation9 + $0x38] sm:$0xff]
    %v633 = vld [vmem:[#allocation9 + $0x40] sm:$0xff]
    %v634 = vld [vmem:[#allocation9 + $0x48] sm:$0xff]
    %v635 = vld [vmem:[#allocation9 + $0x50] sm:$0xff]
    %v636 = vld [vmem:[#allocation9 + $0x58] sm:$0xff]
    %v637 = vld [vmem:[#allocation9 + $0x60] sm:$0xff]
    %v638 = vld [vmem:[#allocation9 + $0x68] sm:$0xff]
    %v639 = vld [vmem:[#allocation9 + $0x70] sm:$0xff]
    %v640 = vld [vmem:[#allocation9 + $0x78] sm:$0xff]
    %641 = vmatprep.subr.mxu0 0.0
    %642 = vmatpush1.msra.mxu0 %v640
    %643 = vmatprep.subr.mxu0 0.0
    %644 = vmatpush1.msra.mxu0 %v639
    %645 = vmatprep.subr.mxu0 0.0
    %646 = vmatpush1.msra.mxu0 %v638
    %647 = vmatprep.subr.mxu0 0.0
    %648 = vmatpush1.msra.mxu0 %v637
    %649 = vmatprep.subr.mxu0 0.0
    %650 = vmatpush1.msra.mxu0 %v636
    %651 = vmatprep.subr.mxu0 0.0
    %652 = vmatpush1.msra.mxu0 %v635
    %653 = vmatprep.subr.mxu0 0.0
    %654 = vmatpush1.msra.mxu0 %v634
    %655 = vmatprep.subr.mxu0 0.0
    %656 = vmatpush1.msra.mxu0 %v633
    %657 = vmatprep.subr.mxu0 0.0
    %658 = vmatpush1.msra.mxu0 %v632
    %659 = vmatprep.subr.mxu0 0.0
    %660 = vmatpush1.msra.mxu0 %v631
    %661 = vmatprep.subr.mxu0 0.0
    %662 = vmatpush1.msra.mxu0 %v630
    %663 = vmatprep.subr.mxu0 0.0
    %664 = vmatpush1.msra.mxu0 %v629
    %665 = vmatprep.subr.mxu0 0.0
    %666 = vmatpush1.msra.mxu0 %v628
    %667 = vmatprep.subr.mxu0 0.0
    %668 = vmatpush1.msra.mxu0 %v627
    %669 = vmatprep.subr.mxu0 0.0
    %670 = vmatpush1.msra.mxu0 %v626
    %671 = vmatprep.subr.mxu0 0.0
    %672 = vmatpush1.msra.mxu0 %v625
    %673 = vmatprep.subr.mxu0 0.0
    %674 = vmatpush2.msra.mxu0 0.0
    %675 = vmatprep.subr.mxu0 0.0
    %676 = vmatpush2.msra.mxu0 0.0
    %677 = vmatprep.subr.mxu0 0.0
    %678 = vmatpush2.msra.mxu0 0.0
    %679 = vmatprep.subr.mxu0 0.0
    %680 = vmatpush2.msra.mxu0 0.0
    %681 = vmatprep.subr.mxu0 0.0
    %682 = vmatpush2.msra.mxu0 0.0
    %683 = vmatprep.subr.mxu0 0.0
    %684 = vmatpush2.msra.mxu0 0.0
    %685 = vmatprep.subr.mxu0 0.0
    %686 = vmatpush2.msra.mxu0 0.0
    %687 = vmatprep.subr.mxu0 0.0
    %688 = vmatpush2.msra.mxu0 0.0
    %689 = vmatprep.subr.mxu0 0.0
    %690 = vmatpush2.msra.mxu0 0.0
    %691 = vmatprep.subr.mxu0 0.0
    %692 = vmatpush2.msra.mxu0 0.0
    %693 = vmatprep.subr.mxu0 0.0
    %694 = vmatpush2.msra.mxu0 0.0
    %695 = vmatprep.subr.mxu0 0.0
    %696 = vmatpush2.msra.mxu0 0.0
    %697 = vmatprep.subr.mxu0 0.0
    %698 = vmatpush2.msra.mxu0 0.0
    %699 = vmatprep.subr.mxu0 0.0
    %700 = vmatpush2.msra.mxu0 0.0
    %701 = vmatprep.subr.mxu0 0.0
    %702 = vmatpush2.msra.mxu0 0.0
    %703 = vmatprep.subr.mxu0 0.0
    %704 = vmatpush2.msra.mxu0 0.0
    %705 = vmatprep.mubr.f32.mxu0 0.0
    %706 = vmatmul.mubr.f32.gmra.mxu0 %v624
    %v707 = vpop.f32.mrf.mxu0
    %v708 = vadd.f32 0.0, %v707
    %v709 = vpop.f32.mrf.mxu0
    %710 = vdwg.mxu0
    %v711 = vmul.f32 %v708, %v708
    %v713 = vrot.slane %v711, 7
    %v715 = vsub.f32 %v708, %v713
    %v716 = vmax.f32 %v715, 0.0
    %v717 = vadd.f32 %v716, 1e-05
    %v718 = vrsqrt.pop %v717
    %v721 = vunpack.c.l.s4 1966171168
    %v722 = vunpack.c.0.s8 %v721
    %v723 = vlaneseq
    %v724 = vshrl.u32 %v723, 7
    %v725 = vsub.s32 %v722, %v724
    %v726 = vrot.slane %v718, %v725
    %v727 = vcombine.high %v726, %v726
    %v729 = vunpack.c.l.s4 1966171168
    %v730 = vunpack.c.0.s8 %v729
    %v731 = vlaneseq
    %v732 = vshrl.u32 %v731, 7
    %v733 = vsub.s32 %v730, %v732
    %v734 = vrot.slane %v727, %v733
    %v736 = vmul.f32 %v599, %v734
    %v737 = vmul.f32 %v708, %v736
    %v738 = vsub.f32 %v600, %v737
    %v740 = vlaneseq
    %v741 = vshrl.u32 %v740, 7
    %v742 = vsub.s32 0, %v741
    %v743 = vrot.slane %v736, %v742
    %v745 = vmul.f32 %v595, %v743
    %v746 = vmul.f32 %v596, %v743
    %v747 = vmul.f32 %v597, %v743
    %v748 = vmul.f32 %v598, %v743
    %v750 = vlaneseq
    %v751 = vshrl.u32 %v750, 7
    %v752 = vsub.s32 0, %v751
    %v753 = vrot.slane %v738, %v752
    %v755 = vadd.f32 %v745, %v753
    %v756 = vadd.f32 %v746, %v753
    %v757 = vadd.f32 %v747, %v753
    %v758 = vadd.f32 %v748, %v753
    %v759 = vmax.f32 %v755, 0.0
    %v760 = vmax.f32 %v756, 0.0
    %v761 = vmax.f32 %v757, 0.0
    %v762 = vmax.f32 %v758, 0.0
    %v763 = vpack.c.bf16 %v760, %v759
    %v764 = vpack.c.bf16 %v762, %v761
    %v767 = vunpack.c.l.b16 %v763
    %v768 = vunpack.c.h.b16 %v763
    %v769 = vunpack.c.l.b16 %v764
    %v770 = vunpack.c.h.b16 %v764
    %v771 = vpack.c.b16 %v767, %v767
    %v772 = vpack.c.b16 %v768, %v768
    %v773 = vpack.c.b16 %v769, %v769
    %v774 = vpack.c.b16 %v770, %v770
    %779 = vst [vmem:[#allocation2 + $0x8] sm:$0xf] %v771
    %780 = vst [vmem:[#allocation2 + $0xc] sm:$0xf] %v772
    %781 = vst [vmem:[#allocation2 + $0x20] sm:$0xf] %v773
    %782 = vst [vmem:[#allocation2 + $0x24] sm:$0xf] %v774
    %v783 = vld [vmem:[#allocation2 + $0x4] sm:$0x8]
    %v784 = vld [vmem:[#allocation2 + $0x8] sm:$0xf]
    %v785 = vld [vmem:[#allocation2 + $0xc] sm:$0xf]
    %v786 = vld [vmem:[#allocation2 + $0x1c] sm:$0x8]
    %v787 = vld [vmem:[#allocation2 + $0x20] sm:$0xf]
    %v788 = vld [vmem:[#allocation2 + $0x24] sm:$0xf]
    %v790 = vshrl.u32 %v783, 16
    %v792 = vrot.slane %v790, 7
    %v793 = vrot.slane %v792, 4
    %v795 = vshrl.u32 %v784, 16
    %v797 = vrot.slane %v795, 7
    %v798 = vshll.u32 %v784, 16
    %v800 = vor.u32 %v797, %v798
    %v801 = vsel %vm126, %v793, %v800
    %v802 = vrot.slane %v797, 4
    %v804 = vshrl.u32 %v785, 16
    %v806 = vrot.slane %v804, 7
    %v807 = vshll.u32 %v785, 16
    %v809 = vor.u32 %v806, %v807
    %v810 = vsel %vm126, %v802, %v809
    %v812 = vshrl.u32 %v786, 16
    %v814 = vrot.slane %v812, 7
    %v815 = vrot.slane %v814, 4
    %v817 = vshrl.u32 %v787, 16
    %v819 = vrot.slane %v817, 7
    %v820 = vshll.u32 %v787, 16
    %v822 = vor.u32 %v819, %v820
    %v823 = vsel %vm126, %v815, %v822
    %v824 = vrot.slane %v819, 4
    %v826 = vshrl.u32 %v788, 16
    %v828 = vrot.slane %v826, 7
    %v829 = vshll.u32 %v788, 16
    %v831 = vor.u32 %v828, %v829
    %v832 = vsel %vm126, %v824, %v831
    %v833 = vld [vmem:[#allocation8] sm:$0xf]
    %v834 = vld [vmem:[#allocation8 + $0x4] sm:$0xf]
    %v835 = vld [vmem:[#allocation8 + $0x8] sm:$0xf]
    %v836 = vld [vmem:[#allocation8 + $0xc] sm:$0xf]
    %v837 = vld [vmem:[#allocation8 + $0x10] sm:$0xf]
    %v838 = vld [vmem:[#allocation8 + $0x14] sm:$0xf]
    %v839 = vld [vmem:[#allocation8 + $0x18] sm:$0xf]
    %v840 = vld [vmem:[#allocation8 + $0x1c] sm:$0xf]
    %v841 = vld [vmem:[#allocation8 + $0x20] sm:$0xf]
    %v842 = vld [vmem:[#allocation8 + $0x24] sm:$0xf]
    %v843 = vld [vmem:[#allocation8 + $0x28] sm:$0xf]
    %v844 = vld [vmem:[#allocation8 + $0x2c] sm:$0xf]
    %v845 = vld [vmem:[#allocation8 + $0x30] sm:$0xf]
    %v846 = vld [vmem:[#allocation8 + $0x34] sm:$0xf]
    %v847 = vld [vmem:[#allocation8 + $0x38] sm:$0xf]
    %v848 = vld [vmem:[#allocation8 + $0x3c] sm:$0xf]
    %v849 = vld [vmem:[#allocation8 + $0x40] sm:$0xf]
    %v850 = vld [vmem:[#allocation8 + $0x44] sm:$0xf]
    %v851 = vld [vmem:[#allocation8 + $0x48] sm:$0xf]
    %v852 = vld [vmem:[#allocation8 + $0x4c] sm:$0xf]
    %v853 = vld [vmem:[#allocation8 + $0x50] sm:$0xf]
    %v854 = vld [vmem:[#allocation8 + $0x54] sm:$0xf]
    %v855 = vld [vmem:[#allocation8 + $0x58] sm:$0xf]
    %v856 = vld [vmem:[#allocation8 + $0x5c] sm:$0xf]
    %v857 = vld [vmem:[#allocation8 + $0x60] sm:$0xf]
    %v858 = vld [vmem:[#allocation8 + $0x64] sm:$0xf]
    %v859 = vld [vmem:[#allocation8 + $0x68] sm:$0xf]
    %v860 = vld [vmem:[#allocation8 + $0x6c] sm:$0xf]
    %v861 = vld [vmem:[#allocation8 + $0x70] sm:$0xf]
    %v862 = vld [vmem:[#allocation8 + $0x74] sm:$0xf]
    %v863 = vld [vmem:[#allocation8 + $0x78] sm:$0xf]
    %v864 = vld [vmem:[#allocation8 + $0x7c] sm:$0xf]
    %v869 = vunpack.c.l.b16 %v784
    %v870 = vunpack.c.l.b16 %v785
    %v871 = vunpack.c.l.b16 %v787
    %v872 = vunpack.c.l.b16 %v788
    %v873 = vpack.c.b16 %v870, %v869
    %v874 = vpack.c.b16 %v872, %v871
    %v893 = vunpack.c.l.b16 %v849
    %v894 = vunpack.c.l.b16 %v850
    %v895 = vunpack.c.l.b16 %v851
    %v896 = vunpack.c.l.b16 %v852
    %v897 = vunpack.c.l.b16 %v853
    %v898 = vunpack.c.l.b16 %v854
    %v899 = vunpack.c.l.b16 %v855
    %v900 = vunpack.c.l.b16 %v856
    %v901 = vunpack.c.l.b16 %v857
    %v902 = vunpack.c.l.b16 %v858
    %v903 = vunpack.c.l.b16 %v859
    %v904 = vunpack.c.l.b16 %v860
    %v905 = vunpack.c.l.b16 %v861
    %v906 = vunpack.c.l.b16 %v862
    %v907 = vunpack.c.l.b16 %v863
    %v908 = vunpack.c.l.b16 %v864
    %v909 = vpack.c.b16 %v894, %v893
    %v910 = vpack.c.b16 %v896, %v895
    %v911 = vpack.c.b16 %v898, %v897
    %v912 = vpack.c.b16 %v900, %v899
    %v913 = vpack.c.b16 %v902, %v901
    %v914 = vpack.c.b16 %v904, %v903
    %v915 = vpack.c.b16 %v906, %v905
    %v916 = vpack.c.b16 %v908, %v907
    %925 = vmatprep.subr.bf16.mxu0 0
    %926 = vmatpush1.bf16.msra.mxu0 %v916
    %927 = vmatprep.subr.bf16.mxu0 0
    %928 = vmatpush1.bf16.msra.mxu0 %v915
    %929 = vmatprep.subr.bf16.mxu0 0
    %930 = vmatpush1.bf16.msra.mxu0 %v914
    %931 = vmatprep.subr.bf16.mxu0 0
    %932 = vmatpush1.bf16.msra.mxu0 %v913
    %933 = vmatprep.subr.bf16.mxu0 0
    %934 = vmatpush1.bf16.msra.mxu0 %v912
    %935 = vmatprep.subr.bf16.mxu0 0
    %936 = vmatpush1.bf16.msra.mxu0 %v911
    %937 = vmatprep.subr.bf16.mxu0 0
    %938 = vmatpush1.bf16.msra.mxu0 %v910
    %939 = vmatprep.subr.bf16.mxu0 0
    %940 = vmatpush1.bf16.msra.mxu0 %v909
    %941 = vmatprep.subr.bf16.mxu0 0
    %942 = vmatpush2.bf16.msra.mxu0 0
    %943 = vmatprep.subr.bf16.mxu0 0
    %944 = vmatpush2.bf16.msra.mxu0 0
    %945 = vmatprep.subr.bf16.mxu0 0
    %946 = vmatpush2.bf16.msra.mxu0 0
    %947 = vmatprep.subr.bf16.mxu0 0
    %948 = vmatpush2.bf16.msra.mxu0 0
    %949 = vmatprep.subr.bf16.mxu0 0
    %950 = vmatpush2.bf16.msra.mxu0 0
    %951 = vmatprep.subr.bf16.mxu0 0
    %952 = vmatpush2.bf16.msra.mxu0 0
    %953 = vmatprep.subr.bf16.mxu0 0
    %954 = vmatpush2.bf16.msra.mxu0 0
    %955 = vmatprep.subr.bf16.mxu0 0
    %956 = vmatpush2.bf16.msra.mxu0 0
    %957 = vmatprep.mubr.bf16.mxu0 0
    %958 = vmatmul.mubr.bf16.gmra.mxu0 %v873
    %v959 = vpop.f32.mrf.mxu0
    %v960 = vadd.f32 0.0, %v959
    %v961 = vpop.f32.mrf.mxu0
    %v962 = vpop.f32.mrf.mxu0
    %v963 = vadd.f32 0.0, %v962
    %v964 = vpop.f32.mrf.mxu0
    %965 = vmatprep.mubr.bf16.mxu0 0
    %966 = vmatmul.mubr.bf16.gmra.mxu0 %v874
    %v967 = vpop.f32.mrf.mxu0
    %v968 = vadd.f32 0.0, %v967
    %v969 = vpop.f32.mrf.mxu0
    %v970 = vpop.f32.mrf.mxu0
    %v971 = vadd.f32 0.0, %v970
    %v972 = vpop.f32.mrf.mxu0
    %973 = vdwg.mxu0
    %v974 = vunpack.c.l.b16 %v801
    %v975 = vunpack.c.l.b16 %v810
    %v976 = vunpack.c.l.b16 %v823
    %v977 = vunpack.c.l.b16 %v832
    %v978 = vpack.c.b16 %v975, %v974
    %v979 = vpack.c.b16 %v977, %v976
    %v998 = vunpack.c.l.b16 %v833
    %v999 = vunpack.c.l.b16 %v834
    %v1000 = vunpack.c.l.b16 %v835
    %v1001 = vunpack.c.l.b16 %v836
    %v1002 = vunpack.c.l.b16 %v837
    %v1003 = vunpack.c.l.b16 %v838
    %v1004 = vunpack.c.l.b16 %v839
    %v1005 = vunpack.c.l.b16 %v840
    %v1006 = vunpack.c.l.b16 %v841
    %v1007 = vunpack.c.l.b16 %v842
    %v1008 = vunpack.c.l.b16 %v843
    %v1009 = vunpack.c.l.b16 %v844
    %v1010 = vunpack.c.l.b16 %v845
    %v1011 = vunpack.c.l.b16 %v846
    %v1012 = vunpack.c.l.b16 %v847
    %v1013 = vunpack.c.l.b16 %v848
    %v1014 = vpack.c.b16 %v999, %v998
    %v1015 = vpack.c.b16 %v1001, %v1000
    %v1016 = vpack.c.b16 %v1003, %v1002
    %v1017 = vpack.c.b16 %v1005, %v1004
    %v1018 = vpack.c.b16 %v1007, %v1006
    %v1019 = vpack.c.b16 %v1009, %v1008
    %v1020 = vpack.c.b16 %v1011, %v1010
    %v1021 = vpack.c.b16 %v1013, %v1012
    %1030 = vmatprep.subr.bf16.mxu0 0
    %1031 = vmatpush1.bf16.msra.mxu0 %v1021
    %1032 = vmatprep.subr.bf16.mxu0 0
    %1033 = vmatpush1.bf16.msra.mxu0 %v1020
    %1034 = vmatprep.subr.bf16.mxu0 0
    %1035 = vmatpush1.bf16.msra.mxu0 %v1019
    %1036 = vmatprep.subr.bf16.mxu0 0
    %1037 = vmatpush1.bf16.msra.mxu0 %v1018
    %1038 = vmatprep.subr.bf16.mxu0 0
    %1039 = vmatpush1.bf16.msra.mxu0 %v1017
    %1040 = vmatprep.subr.bf16.mxu0 0
    %1041 = vmatpush1.bf16.msra.mxu0 %v1016
    %1042 = vmatprep.subr.bf16.mxu0 0
    %1043 = vmatpush1.bf16.msra.mxu0 %v1015
    %1044 = vmatprep.subr.bf16.mxu0 0
    %1045 = vmatpush1.bf16.msra.mxu0 %v1014
    %1046 = vmatprep.subr.bf16.mxu0 0
    %1047 = vmatpush2.bf16.msra.mxu0 0
    %1048 = vmatprep.subr.bf16.mxu0 0
    %1049 = vmatpush2.bf16.msra.mxu0 0
    %1050 = vmatprep.subr.bf16.mxu0 0
    %1051 = vmatpush2.bf16.msra.mxu0 0
    %1052 = vmatprep.subr.bf16.mxu0 0
    %1053 = vmatpush2.bf16.msra.mxu0 0
    %1054 = vmatprep.subr.bf16.mxu0 0
    %1055 = vmatpush2.bf16.msra.mxu0 0
    %1056 = vmatprep.subr.bf16.mxu0 0
    %1057 = vmatpush2.bf16.msra.mxu0 0
    %1058 = vmatprep.subr.bf16.mxu0 0
    %1059 = vmatpush2.bf16.msra.mxu0 0
    %1060 = vmatprep.subr.bf16.mxu0 0
    %1061 = vmatpush2.bf16.msra.mxu0 0
    %1062 = vmatprep.mubr.bf16.mxu0 0
    %1063 = vmatmul.mubr.bf16.gmra.mxu0 %v978
    %v1064 = vpop.f32.mrf.mxu0
    %v1065 = vadd.f32 %v960, %v1064
    %v1066 = vpop.f32.mrf.mxu0
    %v1067 = vpop.f32.mrf.mxu0
    %v1068 = vadd.f32 %v963, %v1067
    %v1069 = vpop.f32.mrf.mxu0
    %1070 = vmatprep.mubr.bf16.mxu0 0
    %1071 = vmatmul.mubr.bf16.gmra.mxu0 %v979
    %v1072 = vpop.f32.mrf.mxu0
    %v1073 = vadd.f32 %v968, %v1072
    %v1074 = vpop.f32.mrf.mxu0
    %v1075 = vpop.f32.mrf.mxu0
    %v1076 = vadd.f32 %v971, %v1075
    %v1077 = vpop.f32.mrf.mxu0
    %1078 = vdwg.mxu0
    %v1079 = vld [vmem:[#allocation2 + $0x8] sm:$0xf]
    %v1080 = vld [vmem:[#allocation2 + $0xc] sm:$0xf]
    %v1081 = vld [vmem:[#allocation2 + $0x10] sm:$0x1]
    %v1082 = vld [vmem:[#allocation2 + $0x20] sm:$0xf]
    %v1083 = vld [vmem:[#allocation2 + $0x24] sm:$0xf]
    %v1084 = vld [vmem:[#allocation2 + $0x28] sm:$0x1]
    %v1086 = vshrl.u32 %v1079, 16
    %v1088 = vrot.slane %v1086, 4
    %v1089 = vshll.u32 %v1079, 16
    %v1091 = vrot.slane %v1089, 5
    %v1092 = vor.u32 %v1088, %v1091
    %v1093 = vrot.slane %v1092, 4
    %v1095 = vshll.u32 %v1080, 16
    %v1097 = vrot.slane %v1095, 5
    %v1098 = vsel %vm425, %v1093, %v1097
    %v1099 = vshrl.u32 %v1080, 16
    %v1101 = vrot.slane %v1099, 4
    %v1102 = vor.u32 %v1101, %v1097
    %v1103 = vrot.slane %v1102, 4
    %v1105 = vshll.u32 %v1081, 16
    %v1107 = vrot.slane %v1105, 5
    %v1108 = vsel %vm425, %v1103, %v1107
    %v1110 = vshrl.u32 %v1082, 16
    %v1112 = vrot.slane %v1110, 4
    %v1113 = vshll.u32 %v1082, 16
    %v1115 = vrot.slane %v1113, 5
    %v1116 = vor.u32 %v1112, %v1115
    %v1117 = vrot.slane %v1116, 4
    %v1119 = vshll.u32 %v1083, 16
    %v1121 = vrot.slane %v1119, 5
    %v1122 = vsel %vm425, %v1117, %v1121
    %v1123 = vshrl.u32 %v1083, 16
    %v1125 = vrot.slane %v1123, 4
    %v1126 = vor.u32 %v1125, %v1121
    %v1127 = vrot.slane %v1126, 4
    %v1129 = vshll.u32 %v1084, 16
    %v1131 = vrot.slane %v1129, 5
    %v1132 = vsel %vm425, %v1127, %v1131
    %v1133 = vld [vmem:[#allocation8 + $0x80] sm:$0xf]
    %v1134 = vld [vmem:[#allocation8 + $0x84] sm:$0xf]
    %v1135 = vld [vmem:[#allocation8 + $0x88] sm:$0xf]
    %v1136 = vld [vmem:[#allocation8 + $0x8c] sm:$0xf]
    %v1137 = vld [vmem:[#allocation8 + $0x90] sm:$0xf]
    %v1138 = vld [vmem:[#allocation8 + $0x94] sm:$0xf]
    %v1139 = vld [vmem:[#allocation8 + $0x98] sm:$0xf]
    %v1140 = vld [vmem:[#allocation8 + $0x9c] sm:$0xf]
    %v1141 = vld [vmem:[#allocation8 + $0xa0] sm:$0xf]
    %v1142 = vld [vmem:[#allocation8 + $0xa4] sm:$0xf]
    %v1143 = vld [vmem:[#allocation8 + $0xa8] sm:$0xf]
    %v1144 = vld [vmem:[#allocation8 + $0xac] sm:$0xf]
    %v1145 = vld [vmem:[#allocation8 + $0xb0] sm:$0xf]
    %v1146 = vld [vmem:[#allocation8 + $0xb4] sm:$0xf]
    %v1147 = vld [vmem:[#allocation8 + $0xb8] sm:$0xf]
    %v1148 = vld [vmem:[#allocation8 + $0xbc] sm:$0xf]
    %v1149 = vunpack.c.l.b16 %v1098
    %v1150 = vunpack.c.l.b16 %v1108
    %v1151 = vunpack.c.l.b16 %v1122
    %v1152 = vunpack.c.l.b16 %v1132
    %v1153 = vpack.c.b16 %v1150, %v1149
    %v1154 = vpack.c.b16 %v1152, %v1151
    %v1173 = vunpack.c.l.b16 %v1133
    %v1174 = vunpack.c.l.b16 %v1134
    %v1175 = vunpack.c.l.b16 %v1135
    %v1176 = vunpack.c.l.b16 %v1136
    %v1177 = vunpack.c.l.b16 %v1137
    %v1178 = vunpack.c.l.b16 %v1138
    %v1179 = vunpack.c.l.b16 %v1139
    %v1180 = vunpack.c.l.b16 %v1140
    %v1181 = vunpack.c.l.b16 %v1141
    %v1182 = vunpack.c.l.b16 %v1142
    %v1183 = vunpack.c.l.b16 %v1143
    %v1184 = vunpack.c.l.b16 %v1144
    %v1185 = vunpack.c.l.b16 %v1145
    %v1186 = vunpack.c.l.b16 %v1146
    %v1187 = vunpack.c.l.b16 %v1147
    %v1188 = vunpack.c.l.b16 %v1148
    %v1189 = vpack.c.b16 %v1174, %v1173
    %v1190 = vpack.c.b16 %v1176, %v1175
    %v1191 = vpack.c.b16 %v1178, %v1177
    %v1192 = vpack.c.b16 %v1180, %v1179
    %v1193 = vpack.c.b16 %v1182, %v1181
    %v1194 = vpack.c.b16 %v1184, %v1183
    %v1195 = vpack.c.b16 %v1186, %v1185
    %v1196 = vpack.c.b16 %v1188, %v1187
    %1205 = vmatprep.subr.bf16.mxu0 0
    %1206 = vmatpush1.bf16.msra.mxu0 %v1196
    %1207 = vmatprep.subr.bf16.mxu0 0
    %1208 = vmatpush1.bf16.msra.mxu0 %v1195
    %1209 = vmatprep.subr.bf16.mxu0 0
    %1210 = vmatpush1.bf16.msra.mxu0 %v1194
    %1211 = vmatprep.subr.bf16.mxu0 0
    %1212 = vmatpush1.bf16.msra.mxu0 %v1193
    %1213 = vmatprep.subr.bf16.mxu0 0
    %1214 = vmatpush1.bf16.msra.mxu0 %v1192
    %1215 = vmatprep.subr.bf16.mxu0 0
    %1216 = vmatpush1.bf16.msra.mxu0 %v1191
    %1217 = vmatprep.subr.bf16.mxu0 0
    %1218 = vmatpush1.bf16.msra.mxu0 %v1190
    %1219 = vmatprep.subr.bf16.mxu0 0
    %1220 = vmatpush1.bf16.msra.mxu0 %v1189
    %1221 = vmatprep.subr.bf16.mxu0 0
    %1222 = vmatpush2.bf16.msra.mxu0 0
    %1223 = vmatprep.subr.bf16.mxu0 0
    %1224 = vmatpush2.bf16.msra.mxu0 0
    %1225 = vmatprep.subr.bf16.mxu0 0
    %1226 = vmatpush2.bf16.msra.mxu0 0
    %1227 = vmatprep.subr.bf16.mxu0 0
    %1228 = vmatpush2.bf16.msra.mxu0 0
    %1229 = vmatprep.subr.bf16.mxu0 0
    %1230 = vmatpush2.bf16.msra.mxu0 0
    %1231 = vmatprep.subr.bf16.mxu0 0
    %1232 = vmatpush2.bf16.msra.mxu0 0
    %1233 = vmatprep.subr.bf16.mxu0 0
    %1234 = vmatpush2.bf16.msra.mxu0 0
    %1235 = vmatprep.subr.bf16.mxu0 0
    %1236 = vmatpush2.bf16.msra.mxu0 0
    %1237 = vmatprep.mubr.bf16.mxu0 0
    %1238 = vmatmul.mubr.bf16.gmra.mxu0 %v1153
    %v1239 = vpop.f32.mrf.mxu0
    %v1240 = vadd.f32 0.0, %v1239
    %v1241 = vpop.f32.mrf.mxu0
    %v1242 = vpop.f32.mrf.mxu0
    %v1243 = vadd.f32 0.0, %v1242
    %v1244 = vpop.f32.mrf.mxu0
    %1245 = vmatprep.mubr.bf16.mxu0 0
    %1246 = vmatmul.mubr.bf16.gmra.mxu0 %v1154
    %v1247 = vpop.f32.mrf.mxu0
    %v1248 = vadd.f32 0.0, %v1247
    %v1249 = vpop.f32.mrf.mxu0
    %v1250 = vpop.f32.mrf.mxu0
    %v1251 = vadd.f32 0.0, %v1250
    %v1252 = vpop.f32.mrf.mxu0
    %1253 = vdwg.mxu0
    %v1254 = vadd.f32 %v1065, %v1240
    %v1255 = vadd.f32 %v1068, %v1243
    %v1256 = vadd.f32 %v1073, %v1248
    %v1257 = vadd.f32 %v1076, %v1251
    %v1258 = vld [vmem:[%s5] sm:$0x1]
    %v1259 = vld [vmem:[%s6] sm:$0x1]
    %v1260 = vadd.f32 %v1254, %v1255
    %v1261 = vadd.f32 %v1260, %v1256
    %v1262 = vadd.f32 %v1261, %v1257
    %v1263 = vrot.slane %v1262, 4
    %v1264 = vadd.f32 %v1262, %v1263
    %v1265 = vrot.slane %v1264, 2
    %v1266 = vadd.f32 %v1264, %v1265
    %v1267 = vrot.slane %v1266, 1
    %v1268 = vadd.f32 %v1266, %v1267
    %v1269 = vmul.f32 %v1254, %v1254
    %v1270 = vmul.f32 %v1255, %v1255
    %v1271 = vmul.f32 %v1256, %v1256
    %v1272 = vmul.f32 %v1257, %v1257
    %v1273 = vadd.f32 %v1269, %v1270
    %v1274 = vadd.f32 %v1273, %v1271
    %v1275 = vadd.f32 %v1274, %v1272
    %v1276 = vrot.slane %v1275, 4
    %v1277 = vadd.f32 %v1275, %v1276
    %v1278 = vrot.slane %v1277, 2
    %v1279 = vadd.f32 %v1277, %v1278
    %v1280 = vrot.slane %v1279, 1
    %v1281 = vadd.f32 %v1279, %v1280
    %v1282 = vsel %vm623, %v1268, %v1281
    %v1283 = vld [vmem:[#allocation9] sm:$0xff]
    %v1284 = vld [vmem:[#allocation9 + $0x8] sm:$0xff]
    %v1285 = vld [vmem:[#allocation9 + $0x10] sm:$0xff]
    %v1286 = vld [vmem:[#allocation9 + $0x18] sm:$0xff]
    %v1287 = vld [vmem:[#allocation9 + $0x20] sm:$0xff]
    %v1288 = vld [vmem:[#allocation9 + $0x28] sm:$0xff]
    %v1289 = vld [vmem:[#allocation9 + $0x30] sm:$0xff]
    %v1290 = vld [vmem:[#allocation9 + $0x38] sm:$0xff]
    %v1291 = vld [vmem:[#allocation9 + $0x40] sm:$0xff]
    %v1292 = vld [vmem:[#allocation9 + $0x48] sm:$0xff]
    %v1293 = vld [vmem:[#allocation9 + $0x50] sm:$0xff]
    %v1294 = vld [vmem:[#allocation9 + $0x58] sm:$0xff]
    %v1295 = vld [vmem:[#allocation9 + $0x60] sm:$0xff]
    %v1296 = vld [vmem:[#allocation9 + $0x68] sm:$0xff]
    %v1297 = vld [vmem:[#allocation9 + $0x70] sm:$0xff]
    %v1298 = vld [vmem:[#allocation9 + $0x78] sm:$0xff]
    %1299 = vmatprep.subr.mxu0 0.0
    %1300 = vmatpush1.msra.mxu0 %v1298
    %1301 = vmatprep.subr.mxu0 0.0
    %1302 = vmatpush1.msra.mxu0 %v1297
    %1303 = vmatprep.subr.mxu0 0.0
    %1304 = vmatpush1.msra.mxu0 %v1296
    %1305 = vmatprep.subr.mxu0 0.0
    %1306 = vmatpush1.msra.mxu0 %v1295
    %1307 = vmatprep.subr.mxu0 0.0
    %1308 = vmatpush1.msra.mxu0 %v1294
    %1309 = vmatprep.subr.mxu0 0.0
    %1310 = vmatpush1.msra.mxu0 %v1293
    %1311 = vmatprep.subr.mxu0 0.0
    %1312 = vmatpush1.msra.mxu0 %v1292
    %1313 = vmatprep.subr.mxu0 0.0
    %1314 = vmatpush1.msra.mxu0 %v1291
    %1315 = vmatprep.subr.mxu0 0.0
    %1316 = vmatpush1.msra.mxu0 %v1290
    %1317 = vmatprep.subr.mxu0 0.0
    %1318 = vmatpush1.msra.mxu0 %v1289
    %1319 = vmatprep.subr.mxu0 0.0
    %1320 = vmatpush1.msra.mxu0 %v1288
    %1321 = vmatprep.subr.mxu0 0.0
    %1322 = vmatpush1.msra.mxu0 %v1287
    %1323 = vmatprep.subr.mxu0 0.0
    %1324 = vmatpush1.msra.mxu0 %v1286
    %1325 = vmatprep.subr.mxu0 0.0
    %1326 = vmatpush1.msra.mxu0 %v1285
    %1327 = vmatprep.subr.mxu0 0.0
    %1328 = vmatpush1.msra.mxu0 %v1284
    %1329 = vmatprep.subr.mxu0 0.0
    %1330 = vmatpush1.msra.mxu0 %v1283
    %1331 = vmatprep.subr.mxu0 0.0
    %1332 = vmatpush2.msra.mxu0 0.0
    %1333 = vmatprep.subr.mxu0 0.0
    %1334 = vmatpush2.msra.mxu0 0.0
    %1335 = vmatprep.subr.mxu0 0.0
    %1336 = vmatpush2.msra.mxu0 0.0
    %1337 = vmatprep.subr.mxu0 0.0
    %1338 = vmatpush2.msra.mxu0 0.0
    %1339 = vmatprep.subr.mxu0 0.0
    %1340 = vmatpush2.msra.mxu0 0.0
    %1341 = vmatprep.subr.mxu0 0.0
    %1342 = vmatpush2.msra.mxu0 0.0
    %1343 = vmatprep.subr.mxu0 0.0
    %1344 = vmatpush2.msra.mxu0 0.0
    %1345 = vmatprep.subr.mxu0 0.0
    %1346 = vmatpush2.msra.mxu0 0.0
    %1347 = vmatprep.subr.mxu0 0.0
    %1348 = vmatpush2.msra.mxu0 0.0
    %1349 = vmatprep.subr.mxu0 0.0
    %1350 = vmatpush2.msra.mxu0 0.0
    %1351 = vmatprep.subr.mxu0 0.0
    %1352 = vmatpush2.msra.mxu0 0.0
    %1353 = vmatprep.subr.mxu0 0.0
    %1354 = vmatpush2.msra.mxu0 0.0
    %1355 = vmatprep.subr.mxu0 0.0
    %1356 = vmatpush2.msra.mxu0 0.0
    %1357 = vmatprep.subr.mxu0 0.0
    %1358 = vmatpush2.msra.mxu0 0.0
    %1359 = vmatprep.subr.mxu0 0.0
    %1360 = vmatpush2.msra.mxu0 0.0
    %1361 = vmatprep.subr.mxu0 0.0
    %1362 = vmatpush2.msra.mxu0 0.0
    %1363 = vmatprep.mubr.f32.mxu0 0.0
    %1364 = vmatmul.mubr.f32.gmra.mxu0 %v1282
    %v1365 = vpop.f32.mrf.mxu0
    %v1366 = vadd.f32 0.0, %v1365
    %v1367 = vpop.f32.mrf.mxu0
    %1368 = vdwg.mxu0
    %v1369 = vmul.f32 %v1366, %v1366
    %v1371 = vrot.slane %v1369, 7
    %v1373 = vsub.f32 %v1366, %v1371
    %v1374 = vmax.f32 %v1373, 0.0
    %v1375 = vadd.f32 %v1374, 1e-05
    %v1376 = vrsqrt.pop %v1375
    %v1379 = vunpack.c.l.s4 1966171168
    %v1380 = vunpack.c.0.s8 %v1379
    %v1381 = vlaneseq
    %v1382 = vshrl.u32 %v1381, 7
    %v1383 = vsub.s32 %v1380, %v1382
    %v1384 = vrot.slane %v1376, %v1383
    %v1385 = vcombine.high %v1384, %v1384
    %v1387 = vunpack.c.l.s4 1966171168
    %v1388 = vunpack.c.0.s8 %v1387
    %v1389 = vlaneseq
    %v1390 = vshrl.u32 %v1389, 7
    %v1391 = vsub.s32 %v1388, %v1390
    %v1392 = vrot.slane %v1385, %v1391
    %v1394 = vmul.f32 %v1258, %v1392
    %v1395 = vmul.f32 %v1366, %v1394
    %v1396 = vsub.f32 %v1259, %v1395
    %v1398 = vlaneseq
    %v1399 = vshrl.u32 %v1398, 7
    %v1400 = vsub.s32 0, %v1399
    %v1401 = vrot.slane %v1394, %v1400
    %v1403 = vmul.f32 %v1254, %v1401
    %v1404 = vmul.f32 %v1255, %v1401
    %v1405 = vmul.f32 %v1256, %v1401
    %v1406 = vmul.f32 %v1257, %v1401
    %v1408 = vlaneseq
    %v1409 = vshrl.u32 %v1408, 7
    %v1410 = vsub.s32 0, %v1409
    %v1411 = vrot.slane %v1396, %v1410
    %v1413 = vadd.f32 %v1403, %v1411
    %v1414 = vadd.f32 %v1404, %v1411
    %v1415 = vadd.f32 %v1405, %v1411
    %v1416 = vadd.f32 %v1406, %v1411
    %v1417 = vadd.f32 %v1413, %v94
    %v1418 = vadd.f32 %v1414, %v95
    %v1419 = vadd.f32 %v1415, %v96
    %v1420 = vadd.f32 %v1416, %v97
    %v1421 = vmax.f32 %v1417, 0.0
    %v1422 = vmax.f32 %v1418, 0.0
    %v1423 = vmax.f32 %v1419, 0.0
    %v1424 = vmax.f32 %v1420, 0.0
    %1425 = vst [vmem:[#allocation11] sm:$0xff] %v1421
    %1426 = vst [vmem:[#allocation11 + $0x8] sm:$0xff] %v1422
    %1427 = vst [vmem:[#allocation11 + $0x10] sm:$0xff] %v1423
    %1428 = vst [vmem:[#allocation11 + $0x18] sm:$0xff] %v1424
    // Predicated region
    $region50: #{tpu_custom_call.1} parent=1 // pred_check
      _
    $region51: #{tpu_custom_call.1} parent=1 // pred_check_branch
      %1430 = sbr.rel (0) target = $region53
    $region52: #{tpu_custom_call.1} parent=1 // pred_region
      %s1432 = ssub.s32 512, 512
      %1433 = vsyncadd [#allocation5], %s1432
      %s1434 = sshll.u32 [#allocation11], 4
      %s1435 = int_to_ptr.vmem [resolvable:$true] %s1434
      %1440 = dma.vmem_to_hbm [thread:$0]  %s1435, 512, %s8, [#allocation5], 128, 128, 8
    $region53: #{tpu_custom_call.1} parent=1 // pred_fallthru
      _
    // Predicated region
    $region54: #{tpu_custom_call.1} parent=1 // pred_check
      _
    $region55: #{tpu_custom_call.1} parent=1 // pred_check_branch
      %1442 = sbr.rel (0) target = $region57
    $region56: #{tpu_custom_call.1} parent=1 // pred_region
      %1443 = dma.done [#allocation5], 512
    $region57: #{tpu_custom_call.1} parent=1 // pred_fallthru
      _
    %1444 = vsyncpa [#allocation4], 1
    %1445 = vsyncpa [#allocation7], 1
    %1446 = vsyncpa [#allocation10], 1
    %1447 = vsyncpa [#allocation5], 1

</llo_original>
